<compile_context>
chip_gen: v6e
topology: v6e:2x2x1
jax: 0.10.0
libtpu: 0.0.40
codegen_flags: <defaults>
</compile_context>

<pallas_src>
import functools

import jax
import jax.numpy as jnp
import numpy as np
from jax import lax
from jax.experimental import pallas as pl
from jax.experimental.pallas import tpu as pltpu


# ---------------------------------------------------------------------------
# Chip-generation heuristics (safe: wrapped in try/except, only pick a path;
# every path is correct on every chip).
# ---------------------------------------------------------------------------
def _device_kind():
    try:
        return jax.devices()[0].device_kind.lower()
    except Exception:
        return ""


def _use_parallel_batch_grid():
    """True -> keep grid=(B,) 'parallel' (multi-TensorCore megacore parts)."""
    kind = _device_kind()
    return any(tag in kind for tag in ("v7", "v5p", "v4"))


def _supports_bf16_vpu():
    """bf16 VPU/EUP exists on v6e / v7x (not v5e)."""
    kind = _device_kind()
    return ("v6" in kind) or ("v7" in kind)


# ---------------------------------------------------------------------------
# Pallas kernel.  One invocation processes `nb` batch elements (statically
# unrolled) on a channels-first (C, N) tile per element.
# ---------------------------------------------------------------------------
def _self_attention_kernel(gamma_ref, x_ref, wfgh_ref, bfgh_ref, wv_ref, bv_ref,
                           o_ref, *, nb, p8, compute_dtype, exp_dtype,
                           approx_recip):
    gamma = gamma_ref[0, 0]                            # scalar from SMEM

    # Statically unrolled over the batch: independent dependency chains let the
    # LLO scheduler overlap batch-0's EUP exp with batch-1's MXU/VPU work.
    for b in range(nb):
        x = x_ref[b]                                   # (C, N), input dtype (f32)
        xc = x.astype(compute_dtype)

        # Fused f/g/h projection: one MXU pass (Kf, C) @ (C, N), f32 accum.
        fgh = jnp.dot(wfgh_ref[...], xc, preferred_element_type=jnp.float32)
        fgh = fgh + bfgh_ref[...]                      # bias is a (Kf, 1) column

        f = fgh[0:p8]                                  # (p8, N); rows >= C//8 are zero
        g = fgh[p8:2 * p8]                             # (p8, N)
        h_ = fgh[2 * p8:]                              # (C2, N)

        # Key-major logits: st[k, q] = sum_c g[c, k] * f[c, q]  (== torch s[q, k]).
        # Softmax over k is a reduction along axis 0, so max/denom come out as
        # lane-dense (1, N) rows -> no relayout; normalization folds into h_.
        st = lax.dot_general(
            g.astype(compute_dtype), f.astype(compute_dtype),
            dimension_numbers=(((0,), (0,)), ((), ())),
            preferred_element_type=jnp.float32)        # (N, N), f32

        m = jnp.max(st, axis=0, keepdims=True)         # (1, N) f32
        # exp in bf16 on v6e/v7x (bf16 EUP, half-size e slab); f32 elsewhere.
        e = jnp.exp((st - m).astype(exp_dtype))        # (N, N) unnormalized softmax
        # Denominator MUST accumulate in f32 (256-term sum of bf16 drifts).
        denom = jnp.sum(e, axis=0, keepdims=True, dtype=jnp.float32)   # (1, N)
        inv = pl.reciprocal(denom, approx=approx_recip)                # EUP slot

        h_scaled = h_ * inv                            # (C2, N): N*C2 mults, not N*N

        # torch quirk: o[c, i] = sum_q h_[c, q] * beta[q, i] (contract over the
        # softmax *query* index).  With key-major e this is
        #   o[c, i] = sum_q h_scaled[c, q] * e[i, q]   (contract last dims).
        o = lax.dot_general(
            h_scaled.astype(compute_dtype), e.astype(compute_dtype),
            dimension_numbers=(((1,), (1,)), ((), ())),
            preferred_element_type=jnp.float32)        # (C2, N)

        # Final 1x1 conv back to C channels: (C, C2) @ (C2, N).
        out = jnp.dot(wv_ref[...], o.astype(compute_dtype),
                      preferred_element_type=jnp.float32) + bv_ref[...]   # (C, N)

        o_ref[b] = (x.astype(jnp.float32) + gamma * out).astype(o_ref.dtype)


# ---------------------------------------------------------------------------
# Wrapper: weight fusion/padding + pallas_call (pure reshapes, no transposes).
# ---------------------------------------------------------------------------
def self_attention(x_nchw, params, *, compute_dtype=jnp.bfloat16,
                   exp_dtype=None, batch_parallel=None, approx_recip=None):
    wf, bf, wg, bg, wh, bh, wv, bv, gamma = params
    B, C, H, W = x_nchw.shape
    N = H * W
    C8 = wf.shape[0]
    C2 = wh.shape[0]

    is_bf16 = jnp.dtype(compute_dtype) == jnp.dtype(jnp.bfloat16)
    if batch_parallel is None:
        batch_parallel = _use_parallel_batch_grid()
    if exp_dtype is None:
        exp_dtype = jnp.bfloat16 if (is_bf16 and _supports_bf16_vpu()) else jnp.float32
    if approx_recip is None:
        approx_recip = bool(is_bf16)   # keep the f32 path a faithful reference

    # Channels-first flat layout: pure reshape, N on the lane axis.
    x_flat = x_nchw.reshape(B, C, N)

    # Fuse [wf; wg; wh]; pad f/g out-dims to a sublane multiple so in-kernel
    # slices are tile aligned.  Padded rows (zero weight, zero bias) contribute
    # exactly zero to the logits.
    p8 = max(8, ((C8 + 7) // 8) * 8)

    def pad_rows(a, rows):
        return jnp.pad(a, ((0, rows - a.shape[0]),) + ((0, 0),) * (a.ndim - 1))

    w_fgh = jnp.concatenate([pad_rows(wf, p8), pad_rows(wg, p8), wh], axis=0)
    b_fgh = jnp.concatenate([pad_rows(bf.reshape(-1, 1), p8),
                             pad_rows(bg.reshape(-1, 1), p8),
                             bh.reshape(-1, 1)], axis=0)           # (Kf, 1)
    Kf = 2 * p8 + C2

    # Weights cast once (constant-folded by XLA); biases / softmax stay f32.
    w_fgh_c = w_fgh.astype(compute_dtype)
    wv_c = wv.astype(compute_dtype)
    bv_col = bv.reshape(C, 1).astype(jnp.float32)
    b_fgh = b_fgh.astype(jnp.float32)
    gamma_s = gamma.reshape(1, 1).astype(jnp.float32)

    # Cost estimate with the PADDED dims actually executed (p8, Kf).  Cast
    # passes are VMEM-internal and excluded; bytes_accessed is HBM traffic.
    x_item = jnp.dtype(x_nchw.dtype).itemsize
    w_item = jnp.dtype(compute_dtype).itemsize
    cost = pl.CostEstimate(
        flops=2 * B * (N * C * Kf                    # fused f/g/h projection
                       + N * N * p8                  # logits
                       + N * N * C2                  # attention apply
                       + N * C2 * C),                # output projection
        transcendentals=B * N * N,                   # exp
        bytes_accessed=(2 * B * C * N * x_item
                        + (w_fgh_c.size + wv_c.size) * w_item
                        + (b_fgh.size + bv_col.size + 1) * 4),
    )

    if batch_parallel:
        # Multi-TC parts (v7x / v5p / v4): one batch element per core.
        nb, grid = 1, (B,)
        x_spec = pl.BlockSpec((1, C, N), lambda b: (b, 0, 0))
        out_spec = pl.BlockSpec((1, C, N), lambda b: (b, 0, 0))
        dim_sem = ("parallel",)
    else:
        # Single-TC parts (v5e / v6e): collapse the batch into one invocation.
        nb, grid = B, (1,)
        x_spec = pl.BlockSpec((B, C, N), lambda b: (0, 0, 0))
        out_spec = pl.BlockSpec((B, C, N), lambda b: (0, 0, 0))
        dim_sem = ("arbitrary",)

    kernel = functools.partial(_self_attention_kernel, nb=nb, p8=p8,
                               compute_dtype=compute_dtype, exp_dtype=exp_dtype,
                               approx_recip=approx_recip)

    out_flat = pl.pallas_call(
        kernel,
        out_shape=jax.ShapeDtypeStruct((B, C, N), x_nchw.dtype),
        grid_spec=pltpu.PrefetchScalarGridSpec(
            num_scalar_prefetch=0,
            grid=grid,
            in_specs=[
                pl.BlockSpec(memory_space=pltpu.MemorySpace.SMEM),  # gamma scalar
                x_spec,                                             # x
                pl.BlockSpec((Kf, C), lambda b: (0, 0)),            # fused W_fgh
                pl.BlockSpec((Kf, 1), lambda b: (0, 0)),            # fused bias
                pl.BlockSpec((C, C2), lambda b: (0, 0)),            # wv
                pl.BlockSpec((C, 1), lambda b: (0, 0)),             # bv
            ],
            out_specs=out_spec,
        ),
        compiler_params=pltpu.CompilerParams(dimension_semantics=dim_sem),
        cost_estimate=cost,
    )(gamma_s, x_flat, w_fgh_c, b_fgh, wv_c, bv_col)

    return out_flat.reshape(B, C, H, W)


# ---------------------------------------------------------------------------
# Parameter setup (plain JAX glue; spectral norm applied as weight preprocessing)
# ---------------------------------------------------------------------------
def _spectral_normalize(w, key, n_iters=1, eps=1e-12):
    out_dim, _ = w.shape
    u = jax.random.normal(key, (out_dim,), dtype=w.dtype)
    u = u / (jnp.linalg.norm(u) + eps)
    v = None
    for _ in range(n_iters):
        v = w.T @ u
        v = v / (jnp.linalg.norm(v) + eps)
        u = w @ v
        u = u / (jnp.linalg.norm(u) + eps)
    sigma = u @ (w @ v)
    return w / sigma


def make_params(key, channels):
    c8, c2 = channels // 8, channels // 2
    keys = jax.random.split(key, 10)

    def conv_init(k, out_c, in_c):
        bound = 1.0 / np.sqrt(in_c)
        kw, kb = jax.random.split(k)
        w = jax.random.uniform(kw, (out_c, in_c), jnp.float32, -bound, bound)
        b = jax.random.uniform(kb, (out_c,), jnp.float32, -bound, bound)
        return w, b

    wf, bf = conv_init(keys[0], c8, channels)
    wg, bg = conv_init(keys[1], c8, channels)
    wh, bh = conv_init(keys[2], c2, channels)
    wv, bv = conv_init(keys[3], channels, c2)

    wf = _spectral_normalize(wf, keys[4])
    wg = _spectral_normalize(wg, keys[5])
    wh = _spectral_normalize(wh, keys[6])
    wv = _spectral_normalize(wv, keys[7])

    # Module inits gamma to zero; nonzero here so the attention path contributes.
    gamma = jnp.array([0.5], dtype=jnp.float32)
    return (wf, bf, wg, bg, wh, bh, wv, bv, gamma)


# ---------------------------------------------------------------------------
# Pure-JAX reference (matches the torch forward, including the beta^T quirk)
# ---------------------------------------------------------------------------
def reference(x, params):
    wf, bf, wg, bg, wh, bh, wv, bv, gamma = params
    B, C, H, W = x.shape
    N = H * W

    def conv1x1(t, w, b):
        return jnp.einsum('bchw,oc->bohw', t, w) + b[None, :, None, None]

    f = conv1x1(x, wf, bf).reshape(B, -1, N)
    g = conv1x1(x, wg, bg).reshape(B, -1, N)
    s = jnp.einsum('bki,bkj->bij', f, g)
    beta = jax.nn.softmax(s, axis=-1)
    h_ = conv1x1(x, wh, bh).reshape(B, -1, N)
    o = jnp.einsum('bcj,bji->bci', h_, beta).reshape(B, C // 2, H, W)
    o = conv1x1(o, wv, bv)
    return x + gamma[0] * o


if __name__ == "__main__":
    key = jax.random.PRNGKey(0)
    k_x, k_p = jax.random.split(key)

    B, C, H, W = 2, 32, 16, 16          # C must be a multiple of 8
    x = jax.random.normal(k_x, (B, C, H, W), dtype=jnp.float32)
    params = make_params(k_p, C)

    ref = reference(x, params)

    # f32 MXU path, exact reciprocal, collapsed batch grid: faithful reference.
    out_f32 = jax.block_until_ready(
        self_attention(x, params, compute_dtype=jnp.float32,
                       batch_parallel=False))
    np.testing.assert_allclose(np.asarray(out_f32), np.asarray(ref),
                               rtol=1e-2, atol=1e-2)

    # bf16 MXU path (default), collapsed batch grid (v5e/v6e production path).
    # exp dtype auto-selects bf16 on v6e/v7x, f32 on v5e; denominator is f32.
    out_bf16 = jax.block_until_ready(
        self_attention(x, params, compute_dtype=jnp.bfloat16,
                       batch_parallel=False))
    np.testing.assert_allclose(np.asarray(out_bf16), np.asarray(ref),
                               rtol=5e-2, atol=5e-2)

    # bf16 MXU path with the per-batch parallel grid (v7x / megacore path);
    # also correct (just a serial loop) on single-TC chips.
    out_par = jax.block_until_ready(
        self_attention(x, params, compute_dtype=jnp.bfloat16,
                       batch_parallel=True))
    np.testing.assert_allclose(np.asarray(out_par), np.asarray(ref),
                               rtol=5e-2, atol=5e-2)

    print("KERNEL_OK")
</pallas_src>

<mosaic_0001>
module attributes {stable_mosaic.version = 11 : i64} {
  func.func @_self_attention_kernel(%arg0: i32, %arg1: memref<1x1xf32, #tpu.memory_space<smem>>, %arg2: memref<2x32x256xf32, #tpu.memory_space<vmem>>, %arg3: memref<32x32xf32, #tpu.memory_space<vmem>>, %arg4: memref<32x1xf32, #tpu.memory_space<vmem>>, %arg5: memref<32x16xf32, #tpu.memory_space<vmem>>, %arg6: memref<32x1xf32, #tpu.memory_space<vmem>>, %arg7: memref<2x32x256xf32, #tpu.memory_space<vmem>>) attributes {dimension_semantics = [#tpu.dimension_semantics<arbitrary>], iteration_bounds = array<i64: 1>, scalar_prefetch = 0 : i64, scratch_operands = 0 : i64, tpu.core_type = #tpu.core_type<tc>, window_params = [{transform_indices = @transform_0, window_bounds = array<i64: 1, 1>}, {pipeline_mode = #tpu.pipeline_mode<synchronous>, transform_indices = @transform_1, window_bounds = array<i64: 2, 32, 256>}, {pipeline_mode = #tpu.pipeline_mode<synchronous>, transform_indices = @transform_2, window_bounds = array<i64: 32, 32>}, {pipeline_mode = #tpu.pipeline_mode<synchronous>, transform_indices = @transform_3, window_bounds = array<i64: 32, 1>}, {pipeline_mode = #tpu.pipeline_mode<synchronous>, transform_indices = @transform_4, window_bounds = array<i64: 32, 16>}, {pipeline_mode = #tpu.pipeline_mode<synchronous>, transform_indices = @transform_5, window_bounds = array<i64: 32, 1>}, {pipeline_mode = #tpu.pipeline_mode<synchronous>, transform_indices = @transform_6, window_bounds = array<i64: 2, 32, 256>}]} {
    %c0 = arith.constant 0 : index
    %c0_0 = arith.constant 0 : index
    %0 = memref.load %arg1[%c0, %c0_0] : memref<1x1xf32, #tpu.memory_space<smem>>
    %c0_1 = arith.constant 0 : index
    %c0_2 = arith.constant 0 : index
    %c0_3 = arith.constant 0 : index
    %1 = vector.load %arg2[%c0_1, %c0_2, %c0_3] : memref<2x32x256xf32, #tpu.memory_space<vmem>>, vector<1x32x256xf32>
    %2 = vector.shape_cast %1 : vector<1x32x256xf32> to vector<32x256xf32>
    %c0_4 = arith.constant 0 : index
    %c0_5 = arith.constant 0 : index
    %3 = vector.load %arg3[%c0_4, %c0_5] : memref<32x32xf32, #tpu.memory_space<vmem>>, vector<32x32xf32>
    %cst = arith.constant dense<0.000000e+00> : vector<32x256xf32>
    %4 = tpu.matmul %3, %2, %cst {dimension_numbers = #tpu.dot_dimension_numbers<[1], [0], [0], [1], [0, 0, 1, 1], [], []>} : vector<32x32xf32>, vector<32x256xf32>, vector<32x256xf32> -> vector<32x256xf32>
    %c0_6 = arith.constant 0 : index
    %c0_7 = arith.constant 0 : index
    %5 = vector.load %arg4[%c0_6, %c0_7] : memref<32x1xf32, #tpu.memory_space<vmem>>, vector<32x1xf32>
    %6 = vector.broadcast %5 : vector<32x1xf32> to vector<32x256xf32>
    %7 = arith.addf %4, %6 : vector<32x256xf32>
    %8 = vector.extract_strided_slice %7 {offsets = [0, 0], sizes = [8, 256], strides = [1, 1]} : vector<32x256xf32> to vector<8x256xf32>
    %9 = vector.extract_strided_slice %7 {offsets = [8, 0], sizes = [8, 256], strides = [1, 1]} : vector<32x256xf32> to vector<8x256xf32>
    %10 = vector.extract_strided_slice %7 {offsets = [16, 0], sizes = [16, 256], strides = [1, 1]} : vector<32x256xf32> to vector<16x256xf32>
    %cst_8 = arith.constant dense<0.000000e+00> : vector<256x256xf32>
    %11 = tpu.matmul %9, %8, %cst_8 {dimension_numbers = #tpu.dot_dimension_numbers<[0], [0], [1], [1], [0, 1, 1, 1], [], []>} : vector<8x256xf32>, vector<8x256xf32>, vector<256x256xf32> -> vector<256x256xf32>
    %cst_9 = arith.constant dense<0xFF800000> : vector<256xf32>
    %12 = vector.multi_reduction <maximumf>, %11, %cst_9 [0] : vector<256x256xf32> to vector<256xf32>
    %13 = vector.shape_cast %12 : vector<256xf32> to vector<1x256xf32>
    %14 = vector.broadcast %13 : vector<1x256xf32> to vector<256x256xf32>
    %15 = arith.subf %11, %14 : vector<256x256xf32>
    %16 = math.exp %15 : vector<256x256xf32>
    %cst_10 = arith.constant dense<0.000000e+00> : vector<256xf32>
    %17 = vector.multi_reduction <add>, %16, %cst_10 [0] : vector<256x256xf32> to vector<256xf32>
    %18 = vector.shape_cast %17 : vector<256xf32> to vector<1x256xf32>
    %19 = tpu.reciprocal %18 : vector<1x256xf32> -> vector<1x256xf32>
    %20 = vector.broadcast %19 : vector<1x256xf32> to vector<16x256xf32>
    %21 = arith.mulf %10, %20 : vector<16x256xf32>
    %cst_11 = arith.constant dense<0.000000e+00> : vector<16x256xf32>
    %22 = tpu.matmul %21, %16, %cst_11 {dimension_numbers = #tpu.dot_dimension_numbers<[1], [1], [0], [0], [0, 0, 1, 0], [], []>} : vector<16x256xf32>, vector<256x256xf32>, vector<16x256xf32> -> vector<16x256xf32>
    %c0_12 = arith.constant 0 : index
    %c0_13 = arith.constant 0 : index
    %23 = vector.load %arg5[%c0_12, %c0_13] : memref<32x16xf32, #tpu.memory_space<vmem>>, vector<32x16xf32>
    %cst_14 = arith.constant dense<0.000000e+00> : vector<32x256xf32>
    %24 = tpu.matmul %23, %22, %cst_14 {dimension_numbers = #tpu.dot_dimension_numbers<[1], [0], [0], [1], [0, 0, 1, 1], [], []>} : vector<32x16xf32>, vector<16x256xf32>, vector<32x256xf32> -> vector<32x256xf32>
    %c0_15 = arith.constant 0 : index
    %c0_16 = arith.constant 0 : index
    %25 = vector.load %arg6[%c0_15, %c0_16] : memref<32x1xf32, #tpu.memory_space<vmem>>, vector<32x1xf32>
    %26 = vector.broadcast %25 : vector<32x1xf32> to vector<32x256xf32>
    %27 = arith.addf %24, %26 : vector<32x256xf32>
    %28 = vector.broadcast %0 : f32 to vector<32x256xf32>
    %29 = arith.mulf %28, %27 : vector<32x256xf32>
    %30 = arith.addf %2, %29 : vector<32x256xf32>
    %c0_17 = arith.constant 0 : index
    %c0_18 = arith.constant 0 : index
    %c0_19 = arith.constant 0 : index
    %31 = vector.load %arg7[%c0_17, %c0_18, %c0_19] : memref<2x32x256xf32, #tpu.memory_space<vmem>>, vector<1x32x256xf32>
    %32 = vector.shape_cast %31 : vector<1x32x256xf32> to vector<32x256xf32>
    %33 = vector.shape_cast %30 : vector<32x256xf32> to vector<1x32x256xf32>
    tpu.vector_store %arg7[%c0_17, %c0_18, %c0_19], %33 {strides = array<i32>} : memref<2x32x256xf32, #tpu.memory_space<vmem>>, vector<1x32x256xf32>,
    %c1 = arith.constant 1 : index
    %c0_20 = arith.constant 0 : index
    %c0_21 = arith.constant 0 : index
    %34 = vector.load %arg2[%c1, %c0_20, %c0_21] : memref<2x32x256xf32, #tpu.memory_space<vmem>>, vector<1x32x256xf32>
    %35 = vector.shape_cast %34 : vector<1x32x256xf32> to vector<32x256xf32>
    %c0_22 = arith.constant 0 : index
    %c0_23 = arith.constant 0 : index
    %36 = vector.load %arg3[%c0_22, %c0_23] : memref<32x32xf32, #tpu.memory_space<vmem>>, vector<32x32xf32>
    %cst_24 = arith.constant dense<0.000000e+00> : vector<32x256xf32>
    %37 = tpu.matmul %36, %35, %cst_24 {dimension_numbers = #tpu.dot_dimension_numbers<[1], [0], [0], [1], [0, 0, 1, 1], [], []>} : vector<32x32xf32>, vector<32x256xf32>, vector<32x256xf32> -> vector<32x256xf32>
    %c0_25 = arith.constant 0 : index
    %c0_26 = arith.constant 0 : index
    %38 = vector.load %arg4[%c0_25, %c0_26] : memref<32x1xf32, #tpu.memory_space<vmem>>, vector<32x1xf32>
    %39 = vector.broadcast %38 : vector<32x1xf32> to vector<32x256xf32>
    %40 = arith.addf %37, %39 : vector<32x256xf32>
    %41 = vector.extract_strided_slice %40 {offsets = [0, 0], sizes = [8, 256], strides = [1, 1]} : vector<32x256xf32> to vector<8x256xf32>
    %42 = vector.extract_strided_slice %40 {offsets = [8, 0], sizes = [8, 256], strides = [1, 1]} : vector<32x256xf32> to vector<8x256xf32>
    %43 = vector.extract_strided_slice %40 {offsets = [16, 0], sizes = [16, 256], strides = [1, 1]} : vector<32x256xf32> to vector<16x256xf32>
    %cst_27 = arith.constant dense<0.000000e+00> : vector<256x256xf32>
    %44 = tpu.matmul %42, %41, %cst_27 {dimension_numbers = #tpu.dot_dimension_numbers<[0], [0], [1], [1], [0, 1, 1, 1], [], []>} : vector<8x256xf32>, vector<8x256xf32>, vector<256x256xf32> -> vector<256x256xf32>
    %cst_28 = arith.constant dense<0xFF800000> : vector<256xf32>
    %45 = vector.multi_reduction <maximumf>, %44, %cst_28 [0] : vector<256x256xf32> to vector<256xf32>
    %46 = vector.shape_cast %45 : vector<256xf32> to vector<1x256xf32>
    %47 = vector.broadcast %46 : vector<1x256xf32> to vector<256x256xf32>
    %48 = arith.subf %44, %47 : vector<256x256xf32>
    %49 = math.exp %48 : vector<256x256xf32>
    %cst_29 = arith.constant dense<0.000000e+00> : vector<256xf32>
    %50 = vector.multi_reduction <add>, %49, %cst_29 [0] : vector<256x256xf32> to vector<256xf32>
    %51 = vector.shape_cast %50 : vector<256xf32> to vector<1x256xf32>
    %52 = tpu.reciprocal %51 : vector<1x256xf32> -> vector<1x256xf32>
    %53 = vector.broadcast %52 : vector<1x256xf32> to vector<16x256xf32>
    %54 = arith.mulf %43, %53 : vector<16x256xf32>
    %cst_30 = arith.constant dense<0.000000e+00> : vector<16x256xf32>
    %55 = tpu.matmul %54, %49, %cst_30 {dimension_numbers = #tpu.dot_dimension_numbers<[1], [1], [0], [0], [0, 0, 1, 0], [], []>} : vector<16x256xf32>, vector<256x256xf32>, vector<16x256xf32> -> vector<16x256xf32>
    %c0_31 = arith.constant 0 : index
    %c0_32 = arith.constant 0 : index
    %56 = vector.load %arg5[%c0_31, %c0_32] : memref<32x16xf32, #tpu.memory_space<vmem>>, vector<32x16xf32>
    %cst_33 = arith.constant dense<0.000000e+00> : vector<32x256xf32>
    %57 = tpu.matmul %56, %55, %cst_33 {dimension_numbers = #tpu.dot_dimension_numbers<[1], [0], [0], [1], [0, 0, 1, 1], [], []>} : vector<32x16xf32>, vector<16x256xf32>, vector<32x256xf32> -> vector<32x256xf32>
    %c0_34 = arith.constant 0 : index
    %c0_35 = arith.constant 0 : index
    %58 = vector.load %arg6[%c0_34, %c0_35] : memref<32x1xf32, #tpu.memory_space<vmem>>, vector<32x1xf32>
    %59 = vector.broadcast %58 : vector<32x1xf32> to vector<32x256xf32>
    %60 = arith.addf %57, %59 : vector<32x256xf32>
    %61 = vector.broadcast %0 : f32 to vector<32x256xf32>
    %62 = arith.mulf %61, %60 : vector<32x256xf32>
    %63 = arith.addf %35, %62 : vector<32x256xf32>
    %c1_36 = arith.constant 1 : index
    %c0_37 = arith.constant 0 : index
    %c0_38 = arith.constant 0 : index
    %64 = vector.load %arg7[%c1_36, %c0_37, %c0_38] : memref<2x32x256xf32, #tpu.memory_space<vmem>>, vector<1x32x256xf32>
    %65 = vector.shape_cast %64 : vector<1x32x256xf32> to vector<32x256xf32>
    %66 = vector.shape_cast %63 : vector<32x256xf32> to vector<1x32x256xf32>
    tpu.vector_store %arg7[%c1_36, %c0_37, %c0_38], %66 {strides = array<i32>} : memref<2x32x256xf32, #tpu.memory_space<vmem>>, vector<1x32x256xf32>,
    return
  }
  func.func @transform_0(%arg0: i32) -> (i32, i32) {
    %c0_i32 = arith.constant 0 : i32
    %c0_i32_0 = arith.constant 0 : i32
    %c0_i32_1 = arith.constant 0 : i32
    return %c0_i32, %c0_i32_0 : i32, i32
  }
  func.func @transform_1(%arg0: i32) -> (i32, i32, i32) {
    %c0_i32 = arith.constant 0 : i32
    %c0_i32_0 = arith.constant 0 : i32
    %c0_i32_1 = arith.constant 0 : i32
    %c0_i32_2 = arith.constant 0 : i32
    return %c0_i32, %c0_i32_0, %c0_i32_1 : i32, i32, i32
  }
  func.func @transform_2(%arg0: i32) -> (i32, i32) {
    %c0_i32 = arith.constant 0 : i32
    %c0_i32_0 = arith.constant 0 : i32
    %c0_i32_1 = arith.constant 0 : i32
    return %c0_i32, %c0_i32_0 : i32, i32
  }
  func.func @transform_3(%arg0: i32) -> (i32, i32) {
    %c0_i32 = arith.constant 0 : i32
    %c0_i32_0 = arith.constant 0 : i32
    %c0_i32_1 = arith.constant 0 : i32
    return %c0_i32, %c0_i32_0 : i32, i32
  }
  func.func @transform_4(%arg0: i32) -> (i32, i32) {
    %c0_i32 = arith.constant 0 : i32
    %c0_i32_0 = arith.constant 0 : i32
    %c0_i32_1 = arith.constant 0 : i32
    return %c0_i32, %c0_i32_0 : i32, i32
  }
  func.func @transform_5(%arg0: i32) -> (i32, i32) {
    %c0_i32 = arith.constant 0 : i32
    %c0_i32_0 = arith.constant 0 : i32
    %c0_i32_1 = arith.constant 0 : i32
    return %c0_i32, %c0_i32_0 : i32, i32
  }
  func.func @transform_6(%arg0: i32) -> (i32, i32, i32) {
    %c0_i32 = arith.constant 0 : i32
    %c0_i32_0 = arith.constant 0 : i32
    %c0_i32_1 = arith.constant 0 : i32
    %c0_i32_2 = arith.constant 0 : i32
    return %c0_i32, %c0_i32_0, %c0_i32_1 : i32, i32, i32
  }
}

</mosaic_0001>

<llo_original>
// kernel: tpu_custom_call.1
$region0: #{tpu_custom_call.1}
  #allocation0 [shape = 'u32[]', space=smem, size = 0x4, offset = 0x4, fixed_abs, tag = 'smem constant byte address 0x4 - core index']
  #allocation1 [shape = 'u32[144,128]{1,0:T(1,128)}', space=vmem, size = 0x12000, scoped, tag = 'internal scratch']
  #allocation2 [shape = 'f32[1,1]{1,0:T(1,128)S(6)}', space=smem, size = 0x200, scoped, tag = 'scoped memory for tpu_custom_call.1']
  %s0 = inlined_call_operand.<no memory space> [shape: f32[1,1], index: 0, kind: input, shape index: {}]
  %s1 = inlined_call_operand.hbm [shape: f32[2,32,256], index: 1, kind: input, shape index: {}]
  %s2 = inlined_call_operand.vmem [shape: f32[32,32], index: 2, kind: input, shape index: {}]
  %s3 = inlined_call_operand.vmem [shape: f32[32,1], index: 3, kind: input, shape index: {}]
  %s4 = inlined_call_operand.vmem [shape: f32[32,16], index: 4, kind: input, shape index: {}]
  %s5 = inlined_call_operand.vmem [shape: f32[32,1], index: 5, kind: input, shape index: {}]
  %s6 = inlined_call_operand.hbm [shape: f32[2,32,256], index: 6, kind: output, shape index: {}]
  %s7 = sld [smem:[#allocation0]]
  $region38: #{tpu_custom_call.1} parent=0
    _
  %s9 = ssub.s32 1, %s7
  %s10 = scalar_select 0, %s9, %s7
  %11 = sst [smem:[#allocation2]] %s0
  $region1: #{tpu_custom_call.1} parent=0
    #allocation3 [shape = 'u8[65536]{0}', space=vmem, size = 0x10000, scoped, tag = 'input window, operand 1, single buffered']
    #allocation4 [shape = 's32[1]{0}', space=sflag, size = 0x4, scoped, tag = 'scoped memory for tpu_custom_call.1']
    #allocation5 [shape = 's32[1]{0}', space=sflag, size = 0x4, scoped, tag = 'scoped memory for tpu_custom_call.1']
    #allocation6 [shape = 'u8[65536]{0}', space=vmem, size = 0x10000, scoped, tag = 'output window, operand 0, single buffered']
    %12 = vsyncpa [#allocation4], 0
    %13 = vsyncpa [#allocation5], 0
    // Predicated region
    $region2: #{tpu_custom_call.1} parent=1 // pred_check
      _
    $region3: #{tpu_custom_call.1} parent=1 // pred_check_branch
      %15 = sbr.rel (0) target = $region5
    $region4: #{tpu_custom_call.1} parent=1 // pred_region
      _
    $region5: #{tpu_custom_call.1} parent=1 // pred_fallthru
      _
    // Predicated region
    $region6: #{tpu_custom_call.1} parent=1 // pred_check
      _
    $region7: #{tpu_custom_call.1} parent=1 // pred_check_branch
      %17 = sbr.rel (0) target = $region9
    $region8: #{tpu_custom_call.1} parent=1 // pred_region
      %s19 = ssub.s32 2048, 2048
      %20 = vsyncadd [#allocation4], %s19
      %s21 = sshll.u32 [#allocation3], 4
      %s22 = int_to_ptr.vmem [resolvable:$true] %s21
      %27 = dma.hbm_to_vmem [thread:$0]  %s1, 2048, %s22, [#allocation4], 256, 256, 16
    $region9: #{tpu_custom_call.1} parent=1 // pred_fallthru
      _
    // Predicated region
    $region10: #{tpu_custom_call.1} parent=1 // pred_check
      _
    $region11: #{tpu_custom_call.1} parent=1 // pred_check_branch
      %29 = sbr.rel (0) target = $region13
    $region12: #{tpu_custom_call.1} parent=1 // pred_region
      _
    $region13: #{tpu_custom_call.1} parent=1 // pred_fallthru
      _
    // Predicated region
    $region14: #{tpu_custom_call.1} parent=1 // pred_check
      _
    $region15: #{tpu_custom_call.1} parent=1 // pred_check_branch
      %31 = sbr.rel (0) target = $region17
    $region16: #{tpu_custom_call.1} parent=1 // pred_region
      _
    $region17: #{tpu_custom_call.1} parent=1 // pred_fallthru
      _
    // Predicated region
    $region18: #{tpu_custom_call.1} parent=1 // pred_check
      _
    $region19: #{tpu_custom_call.1} parent=1 // pred_check_branch
      %33 = sbr.rel (0) target = $region21
    $region20: #{tpu_custom_call.1} parent=1 // pred_region
      _
    $region21: #{tpu_custom_call.1} parent=1 // pred_fallthru
      _
    // Predicated region
    $region22: #{tpu_custom_call.1} parent=1 // pred_check
      _
    $region23: #{tpu_custom_call.1} parent=1 // pred_check_branch
      %35 = sbr.rel (0) target = $region25
    $region24: #{tpu_custom_call.1} parent=1 // pred_region
      _
    $region25: #{tpu_custom_call.1} parent=1 // pred_fallthru
      _
    // Predicated region
    $region26: #{tpu_custom_call.1} parent=1 // pred_check
      _
    $region27: #{tpu_custom_call.1} parent=1 // pred_check_branch
      %37 = sbr.rel (0) target = $region29
    $region28: #{tpu_custom_call.1} parent=1 // pred_region
      %38 = dma.done [#allocation4], 2048
    $region29: #{tpu_custom_call.1} parent=1 // pred_fallthru
      _
    %s39 = sld [smem:[#allocation2]]
    %v40 = vld [vmem:[#allocation3] sm:$0xff]
    %v41 = vld [vmem:[#allocation3 + $0x8] sm:$0xff]
    %v42 = vld [vmem:[#allocation3 + $0x10] sm:$0xff]
    %v43 = vld [vmem:[#allocation3 + $0x18] sm:$0xff]
    %v44 = vld [vmem:[#allocation3 + $0x20] sm:$0xff]
    %v45 = vld [vmem:[#allocation3 + $0x28] sm:$0xff]
    %v46 = vld [vmem:[#allocation3 + $0x30] sm:$0xff]
    %v47 = vld [vmem:[#allocation3 + $0x38] sm:$0xff]
    %v48 = vld [vmem:[%s2] sm:$0xff]
    %v49 = vld [vmem:[%s2 + $0x8] sm:$0xff]
    %v50 = vld [vmem:[%s2 + $0x10] sm:$0xff]
    %v51 = vld [vmem:[%s2 + $0x18] sm:$0xff]
    %v52 = vld [vmem:[%s3] sm:$0xff]
    %v53 = vld [vmem:[%s3 + $0x8] sm:$0xff]
    %v54 = vld [vmem:[%s3 + $0x10] sm:$0xff]
    %v55 = vld [vmem:[%s3 + $0x18] sm:$0xff]
    %57 = vset.pattern.permute.xlu0 0
    %58 = vperm.xlu0 %57, %v52
    %v59 = vpop.permute.xlu0 %58
    %62 = vset.pattern.permute.xlu0 0
    %63 = vperm.xlu0 %62, %v53
    %v64 = vpop.permute.xlu0 %63
    %67 = vset.pattern.permute.xlu0 0
    %68 = vperm.xlu0 %67, %v54
    %v69 = vpop.permute.xlu0 %68
    %72 = vset.pattern.permute.xlu0 0
    %73 = vperm.xlu0 %72, %v55
    %v74 = vpop.permute.xlu0 %73
    %vm76 = vcmask 261120
    %v78 = vsel %vm76, %v48, 0
    %v81 = vsel %vm76, %v49, 0
    %v84 = vsel %vm76, %v50, 0
    %v87 = vsel %vm76, %v51, 0
    %89 = vmatprep.subr.mxu0 0.0
    %90 = vmatpush1.msra.mxu0 0.0
    %91 = vmatprep.subr.mxu0 0.0
    %92 = vmatpush1.msra.mxu0 0.0
    %93 = vmatprep.subr.mxu0 0.0
    %94 = vmatpush1.msra.mxu0 0.0
    %95 = vmatprep.subr.mxu0 0.0
    %96 = vmatpush1.msra.mxu0 0.0
    %97 = vmatprep.subr.mxu0 0.0
    %98 = vmatpush1.msra.mxu0 0.0
    %99 = vmatprep.subr.mxu0 0.0
    %100 = vmatpush1.msra.mxu0 0.0
    %101 = vmatprep.subr.mxu0 0.0
    %102 = vmatpush1.msra.mxu0 0.0
    %103 = vmatprep.subr.mxu0 0.0
    %104 = vmatpush1.msra.mxu0 0.0
    %105 = vmatprep.subr.mxu0 0.0
    %106 = vmatpush1.msra.mxu0 0.0
    %107 = vmatprep.subr.mxu0 0.0
    %108 = vmatpush1.msra.mxu0 0.0
    %109 = vmatprep.subr.mxu0 0.0
    %110 = vmatpush1.msra.mxu0 0.0
    %111 = vmatprep.subr.mxu0 0.0
    %112 = vmatpush1.msra.mxu0 0.0
    %113 = vmatprep.subr.mxu0 %v47
    %114 = vmatpush1.msra.mxu0 %v46
    %115 = vmatprep.subr.mxu0 %v45
    %116 = vmatpush1.msra.mxu0 %v44
    %117 = vmatprep.subr.mxu0 %v43
    %118 = vmatpush1.msra.mxu0 %v42
    %119 = vmatprep.subr.mxu0 %v41
    %120 = vmatpush1.msra.mxu0 %v40
    %121 = vmatprep.subr.mxu0 0.0
    %122 = vmatpush2.msra.mxu0 0.0
    %123 = vmatprep.subr.mxu0 0.0
    %124 = vmatpush2.msra.mxu0 0.0
    %125 = vmatprep.subr.mxu0 0.0
    %126 = vmatpush2.msra.mxu0 0.0
    %127 = vmatprep.subr.mxu0 0.0
    %128 = vmatpush2.msra.mxu0 0.0
    %129 = vmatprep.subr.mxu0 0.0
    %130 = vmatpush2.msra.mxu0 0.0
    %131 = vmatprep.subr.mxu0 0.0
    %132 = vmatpush2.msra.mxu0 0.0
    %133 = vmatprep.subr.mxu0 0.0
    %134 = vmatpush2.msra.mxu0 0.0
    %135 = vmatprep.subr.mxu0 0.0
    %136 = vmatpush2.msra.mxu0 0.0
    %137 = vmatprep.subr.mxu0 0.0
    %138 = vmatpush2.msra.mxu0 0.0
    %139 = vmatprep.subr.mxu0 0.0
    %140 = vmatpush2.msra.mxu0 0.0
    %141 = vmatprep.subr.mxu0 0.0
    %142 = vmatpush2.msra.mxu0 0.0
    %143 = vmatprep.subr.mxu0 0.0
    %144 = vmatpush2.msra.mxu0 0.0
    %145 = vmatprep.subr.mxu0 0.0
    %146 = vmatpush2.msra.mxu0 0.0
    %147 = vmatprep.subr.mxu0 0.0
    %148 = vmatpush2.msra.mxu0 0.0
    %149 = vmatprep.subr.mxu0 0.0
    %150 = vmatpush2.msra.mxu0 0.0
    %151 = vmatprep.subr.mxu0 0.0
    %152 = vmatpush2.msra.mxu0 0.0
    %153 = vmatprep.mubr.f32.mxu0 0.0
    %154 = vmatmul.mubr.f32.gmra.mxu0 %v78
    %v155 = vpop.f32.mrf.mxu0
    %v156 = vadd.f32 %v59, %v155
    %v157 = vpop.f32.mrf.mxu0
    %v158 = vadd.f32 %v59, %v157
    %159 = vmatprep.mubr.f32.mxu0 0.0
    %160 = vmatmul.mubr.f32.gmra.mxu0 %v81
    %v161 = vpop.f32.mrf.mxu0
    %v162 = vadd.f32 %v64, %v161
    %v163 = vpop.f32.mrf.mxu0
    %v164 = vadd.f32 %v64, %v163
    %165 = vmatprep.mubr.f32.mxu0 0.0
    %166 = vmatmul.mubr.f32.gmra.mxu0 %v84
    %v167 = vpop.f32.mrf.mxu0
    %v168 = vadd.f32 %v69, %v167
    %v169 = vpop.f32.mrf.mxu0
    %v170 = vadd.f32 %v69, %v169
    %171 = vmatprep.mubr.f32.mxu0 0.0
    %172 = vmatmul.mubr.f32.gmra.mxu0 %v87
    %v173 = vpop.f32.mrf.mxu0
    %v174 = vadd.f32 %v74, %v173
    %v175 = vpop.f32.mrf.mxu0
    %v176 = vadd.f32 %v74, %v175
    %177 = vdwg.mxu0
    %178 = vxpose.xlu0.b32.start [1/16] %v162, 128
    %179 = vxpose.xlu0.b32.cont [2/16] 0.0, 128
    %180 = vxpose.xlu0.b32.cont [3/16] 0.0, 128
    %181 = vxpose.xlu0.b32.cont [4/16] 0.0, 128
    %182 = vxpose.xlu0.b32.cont [5/16] 0.0, 128
    %183 = vxpose.xlu0.b32.cont [6/16] 0.0, 128
    %184 = vxpose.xlu0.b32.cont [7/16] 0.0, 128
    %185 = vxpose.xlu0.b32.cont [8/16] 0.0, 128
    %186 = vxpose.xlu0.b32.cont [9/16] 0.0, 128
    %187 = vxpose.xlu0.b32.cont [10/16] 0.0, 128
    %188 = vxpose.xlu0.b32.cont [11/16] 0.0, 128
    %189 = vxpose.xlu0.b32.cont [12/16] 0.0, 128
    %190 = vxpose.xlu0.b32.cont [13/16] 0.0, 128
    %191 = vxpose.xlu0.b32.cont [14/16] 0.0, 128
    %192 = vxpose.xlu0.b32.cont [15/16] 0.0, 128
    %193 = vxpose.xlu0.b32.end [16/16] 0.0, 128
    %v194 = vpop.trf.xlu0
    %v195 = vpop.trf.xlu0
    %v196 = vpop.trf.xlu0
    %v197 = vpop.trf.xlu0
    %v198 = vpop.trf.xlu0
    %v199 = vpop.trf.xlu0
    %v200 = vpop.trf.xlu0
    %v201 = vpop.trf.xlu0
    %v202 = vpop.trf.xlu0
    %v203 = vpop.trf.xlu0
    %v204 = vpop.trf.xlu0
    %v205 = vpop.trf.xlu0
    %v206 = vpop.trf.xlu0
    %v207 = vpop.trf.xlu0
    %v208 = vpop.trf.xlu0
    %v209 = vpop.trf.xlu0
    %210 = vxpose.xlu0.b32.start [1/16] %v164, 128
    %211 = vxpose.xlu0.b32.cont [2/16] 0.0, 128
    %212 = vxpose.xlu0.b32.cont [3/16] 0.0, 128
    %213 = vxpose.xlu0.b32.cont [4/16] 0.0, 128
    %214 = vxpose.xlu0.b32.cont [5/16] 0.0, 128
    %215 = vxpose.xlu0.b32.cont [6/16] 0.0, 128
    %216 = vxpose.xlu0.b32.cont [7/16] 0.0, 128
    %217 = vxpose.xlu0.b32.cont [8/16] 0.0, 128
    %218 = vxpose.xlu0.b32.cont [9/16] 0.0, 128
    %219 = vxpose.xlu0.b32.cont [10/16] 0.0, 128
    %220 = vxpose.xlu0.b32.cont [11/16] 0.0, 128
    %221 = vxpose.xlu0.b32.cont [12/16] 0.0, 128
    %222 = vxpose.xlu0.b32.cont [13/16] 0.0, 128
    %223 = vxpose.xlu0.b32.cont [14/16] 0.0, 128
    %224 = vxpose.xlu0.b32.cont [15/16] 0.0, 128
    %225 = vxpose.xlu0.b32.end [16/16] 0.0, 128
    %v226 = vpop.trf.xlu0
    %v227 = vpop.trf.xlu0
    %v228 = vpop.trf.xlu0
    %v229 = vpop.trf.xlu0
    %v230 = vpop.trf.xlu0
    %v231 = vpop.trf.xlu0
    %v232 = vpop.trf.xlu0
    %v233 = vpop.trf.xlu0
    %v234 = vpop.trf.xlu0
    %v235 = vpop.trf.xlu0
    %v236 = vpop.trf.xlu0
    %v237 = vpop.trf.xlu0
    %v238 = vpop.trf.xlu0
    %v239 = vpop.trf.xlu0
    %v240 = vpop.trf.xlu0
    %v241 = vpop.trf.xlu0
    %vm242 = vcmask 64512
    %v244 = vsel %vm242, %v194, 0
    %v247 = vsel %vm242, %v195, 0
    %v250 = vsel %vm242, %v196, 0
    %v253 = vsel %vm242, %v197, 0
    %v256 = vsel %vm242, %v198, 0
    %v259 = vsel %vm242, %v199, 0
    %v262 = vsel %vm242, %v200, 0
    %v265 = vsel %vm242, %v201, 0
    %v268 = vsel %vm242, %v202, 0
    %v271 = vsel %vm242, %v203, 0
    %v274 = vsel %vm242, %v204, 0
    %v277 = vsel %vm242, %v205, 0
    %v280 = vsel %vm242, %v206, 0
    %v283 = vsel %vm242, %v207, 0
    %v286 = vsel %vm242, %v208, 0
    %v289 = vsel %vm242, %v209, 0
    %v292 = vsel %vm242, %v226, 0
    %v295 = vsel %vm242, %v227, 0
    %v298 = vsel %vm242, %v228, 0
    %v301 = vsel %vm242, %v229, 0
    %v304 = vsel %vm242, %v230, 0
    %v307 = vsel %vm242, %v231, 0
    %v310 = vsel %vm242, %v232, 0
    %v313 = vsel %vm242, %v233, 0
    %v316 = vsel %vm242, %v234, 0
    %v319 = vsel %vm242, %v235, 0
    %v322 = vsel %vm242, %v236, 0
    %v325 = vsel %vm242, %v237, 0
    %v328 = vsel %vm242, %v238, 0
    %v331 = vsel %vm242, %v239, 0
    %v334 = vsel %vm242, %v240, 0
    %v337 = vsel %vm242, %v241, 0
    %339 = vmatprep.subr.mxu0 0.0
    %340 = vmatpush1.msra.mxu0 0.0
    %341 = vmatprep.subr.mxu0 0.0
    %342 = vmatpush1.msra.mxu0 0.0
    %343 = vmatprep.subr.mxu0 0.0
    %344 = vmatpush1.msra.mxu0 0.0
    %345 = vmatprep.subr.mxu0 0.0
    %346 = vmatpush1.msra.mxu0 0.0
    %347 = vmatprep.subr.mxu0 0.0
    %348 = vmatpush1.msra.mxu0 0.0
    %349 = vmatprep.subr.mxu0 0.0
    %350 = vmatpush1.msra.mxu0 0.0
    %351 = vmatprep.subr.mxu0 0.0
    %352 = vmatpush1.msra.mxu0 0.0
    %353 = vmatprep.subr.mxu0 0.0
    %354 = vmatpush1.msra.mxu0 0.0
    %355 = vmatprep.subr.mxu0 0.0
    %356 = vmatpush1.msra.mxu0 0.0
    %357 = vmatprep.subr.mxu0 0.0
    %358 = vmatpush1.msra.mxu0 0.0
    %359 = vmatprep.subr.mxu0 0.0
    %360 = vmatpush1.msra.mxu0 0.0
    %361 = vmatprep.subr.mxu0 0.0
    %362 = vmatpush1.msra.mxu0 0.0
    %363 = vmatprep.subr.mxu0 0.0
    %364 = vmatpush1.msra.mxu0 0.0
    %365 = vmatprep.subr.mxu0 0.0
    %366 = vmatpush1.msra.mxu0 0.0
    %367 = vmatprep.subr.mxu0 0.0
    %368 = vmatpush1.msra.mxu0 0.0
    %369 = vmatprep.subr.mxu0 %v158
    %370 = vmatpush1.msra.mxu0 %v156
    %371 = vmatprep.subr.mxu0 0.0
    %372 = vmatpush2.msra.mxu0 0.0
    %373 = vmatprep.subr.mxu0 0.0
    %374 = vmatpush2.msra.mxu0 0.0
    %375 = vmatprep.subr.mxu0 0.0
    %376 = vmatpush2.msra.mxu0 0.0
    %377 = vmatprep.subr.mxu0 0.0
    %378 = vmatpush2.msra.mxu0 0.0
    %379 = vmatprep.subr.mxu0 0.0
    %380 = vmatpush2.msra.mxu0 0.0
    %381 = vmatprep.subr.mxu0 0.0
    %382 = vmatpush2.msra.mxu0 0.0
    %383 = vmatprep.subr.mxu0 0.0
    %384 = vmatpush2.msra.mxu0 0.0
    %385 = vmatprep.subr.mxu0 0.0
    %386 = vmatpush2.msra.mxu0 0.0
    %387 = vmatprep.subr.mxu0 0.0
    %388 = vmatpush2.msra.mxu0 0.0
    %389 = vmatprep.subr.mxu0 0.0
    %390 = vmatpush2.msra.mxu0 0.0
    %391 = vmatprep.subr.mxu0 0.0
    %392 = vmatpush2.msra.mxu0 0.0
    %393 = vmatprep.subr.mxu0 0.0
    %394 = vmatpush2.msra.mxu0 0.0
    %395 = vmatprep.subr.mxu0 0.0
    %396 = vmatpush2.msra.mxu0 0.0
    %397 = vmatprep.subr.mxu0 0.0
    %398 = vmatpush2.msra.mxu0 0.0
    %399 = vmatprep.subr.mxu0 0.0
    %400 = vmatpush2.msra.mxu0 0.0
    %401 = vmatprep.subr.mxu0 0.0
    %402 = vmatpush2.msra.mxu0 0.0
    %403 = vmatprep.mubr.f32.mxu0 0.0
    %404 = vmatmul.mubr.f32.gmra.mxu0 %v244
    %v405 = vpop.f32.mrf.mxu0
    %v406 = vadd.f32 0.0, %v405
    %v407 = vpop.f32.mrf.mxu0
    %v408 = vadd.f32 0.0, %v407
    %409 = vmatprep.mubr.f32.mxu0 0.0
    %410 = vmatmul.mubr.f32.gmra.mxu0 %v247
    %v411 = vpop.f32.mrf.mxu0
    %v412 = vadd.f32 0.0, %v411
    %v413 = vpop.f32.mrf.mxu0
    %v414 = vadd.f32 0.0, %v413
    %415 = vmatprep.mubr.f32.mxu0 0.0
    %416 = vmatmul.mubr.f32.gmra.mxu0 %v250
    %v417 = vpop.f32.mrf.mxu0
    %v418 = vadd.f32 0.0, %v417
    %v419 = vpop.f32.mrf.mxu0
    %v420 = vadd.f32 0.0, %v419
    %421 = vmatprep.mubr.f32.mxu0 0.0
    %422 = vmatmul.mubr.f32.gmra.mxu0 %v253
    %v423 = vpop.f32.mrf.mxu0
    %v424 = vadd.f32 0.0, %v423
    %v425 = vpop.f32.mrf.mxu0
    %v426 = vadd.f32 0.0, %v425
    %427 = vmatprep.mubr.f32.mxu0 0.0
    %428 = vmatmul.mubr.f32.gmra.mxu0 %v256
    %v429 = vpop.f32.mrf.mxu0
    %v430 = vadd.f32 0.0, %v429
    %v431 = vpop.f32.mrf.mxu0
    %v432 = vadd.f32 0.0, %v431
    %433 = vmatprep.mubr.f32.mxu0 0.0
    %434 = vmatmul.mubr.f32.gmra.mxu0 %v259
    %v435 = vpop.f32.mrf.mxu0
    %v436 = vadd.f32 0.0, %v435
    %v437 = vpop.f32.mrf.mxu0
    %v438 = vadd.f32 0.0, %v437
    %439 = vmatprep.mubr.f32.mxu0 0.0
    %440 = vmatmul.mubr.f32.gmra.mxu0 %v262
    %v441 = vpop.f32.mrf.mxu0
    %v442 = vadd.f32 0.0, %v441
    %v443 = vpop.f32.mrf.mxu0
    %v444 = vadd.f32 0.0, %v443
    %445 = vmatprep.mubr.f32.mxu0 0.0
    %446 = vmatmul.mubr.f32.gmra.mxu0 %v265
    %v447 = vpop.f32.mrf.mxu0
    %v448 = vadd.f32 0.0, %v447
    %v449 = vpop.f32.mrf.mxu0
    %v450 = vadd.f32 0.0, %v449
    %451 = vmatprep.mubr.f32.mxu0 0.0
    %452 = vmatmul.mubr.f32.gmra.mxu0 %v268
    %v453 = vpop.f32.mrf.mxu0
    %v454 = vadd.f32 0.0, %v453
    %v455 = vpop.f32.mrf.mxu0
    %v456 = vadd.f32 0.0, %v455
    %457 = vmatprep.mubr.f32.mxu0 0.0
    %458 = vmatmul.mubr.f32.gmra.mxu0 %v271
    %v459 = vpop.f32.mrf.mxu0
    %v460 = vadd.f32 0.0, %v459
    %v461 = vpop.f32.mrf.mxu0
    %v462 = vadd.f32 0.0, %v461
    %463 = vmatprep.mubr.f32.mxu0 0.0
    %464 = vmatmul.mubr.f32.gmra.mxu0 %v274
    %v465 = vpop.f32.mrf.mxu0
    %v466 = vadd.f32 0.0, %v465
    %v467 = vpop.f32.mrf.mxu0
    %v468 = vadd.f32 0.0, %v467
    %469 = vmatprep.mubr.f32.mxu0 0.0
    %470 = vmatmul.mubr.f32.gmra.mxu0 %v277
    %v471 = vpop.f32.mrf.mxu0
    %v472 = vadd.f32 0.0, %v471
    %v473 = vpop.f32.mrf.mxu0
    %v474 = vadd.f32 0.0, %v473
    %475 = vmatprep.mubr.f32.mxu0 0.0
    %476 = vmatmul.mubr.f32.gmra.mxu0 %v280
    %v477 = vpop.f32.mrf.mxu0
    %v478 = vadd.f32 0.0, %v477
    %v479 = vpop.f32.mrf.mxu0
    %v480 = vadd.f32 0.0, %v479
    %481 = vmatprep.mubr.f32.mxu0 0.0
    %482 = vmatmul.mubr.f32.gmra.mxu0 %v283
    %v483 = vpop.f32.mrf.mxu0
    %v484 = vadd.f32 0.0, %v483
    %v485 = vpop.f32.mrf.mxu0
    %v486 = vadd.f32 0.0, %v485
    %487 = vmatprep.mubr.f32.mxu0 0.0
    %488 = vmatmul.mubr.f32.gmra.mxu0 %v286
    %v489 = vpop.f32.mrf.mxu0
    %v490 = vadd.f32 0.0, %v489
    %v491 = vpop.f32.mrf.mxu0
    %v492 = vadd.f32 0.0, %v491
    %493 = vmatprep.mubr.f32.mxu0 0.0
    %494 = vmatmul.mubr.f32.gmra.mxu0 %v289
    %v495 = vpop.f32.mrf.mxu0
    %v496 = vadd.f32 0.0, %v495
    %v497 = vpop.f32.mrf.mxu0
    %v498 = vadd.f32 0.0, %v497
    %499 = vmatprep.mubr.f32.mxu0 0.0
    %500 = vmatmul.mubr.f32.gmra.mxu0 %v292
    %v501 = vpop.f32.mrf.mxu0
    %v502 = vadd.f32 0.0, %v501
    %v503 = vpop.f32.mrf.mxu0
    %v504 = vadd.f32 0.0, %v503
    %505 = vmatprep.mubr.f32.mxu0 0.0
    %506 = vmatmul.mubr.f32.gmra.mxu0 %v295
    %v507 = vpop.f32.mrf.mxu0
    %v508 = vadd.f32 0.0, %v507
    %v509 = vpop.f32.mrf.mxu0
    %v510 = vadd.f32 0.0, %v509
    %511 = vmatprep.mubr.f32.mxu0 0.0
    %512 = vmatmul.mubr.f32.gmra.mxu0 %v298
    %v513 = vpop.f32.mrf.mxu0
    %v514 = vadd.f32 0.0, %v513
    %v515 = vpop.f32.mrf.mxu0
    %v516 = vadd.f32 0.0, %v515
    %517 = vmatprep.mubr.f32.mxu0 0.0
    %518 = vmatmul.mubr.f32.gmra.mxu0 %v301
    %v519 = vpop.f32.mrf.mxu0
    %v520 = vadd.f32 0.0, %v519
    %v521 = vpop.f32.mrf.mxu0
    %v522 = vadd.f32 0.0, %v521
    %523 = vmatprep.mubr.f32.mxu0 0.0
    %524 = vmatmul.mubr.f32.gmra.mxu0 %v304
    %v525 = vpop.f32.mrf.mxu0
    %v526 = vadd.f32 0.0, %v525
    %v527 = vpop.f32.mrf.mxu0
    %v528 = vadd.f32 0.0, %v527
    %529 = vmatprep.mubr.f32.mxu0 0.0
    %530 = vmatmul.mubr.f32.gmra.mxu0 %v307
    %v531 = vpop.f32.mrf.mxu0
    %v532 = vadd.f32 0.0, %v531
    %v533 = vpop.f32.mrf.mxu0
    %v534 = vadd.f32 0.0, %v533
    %535 = vmatprep.mubr.f32.mxu0 0.0
    %536 = vmatmul.mubr.f32.gmra.mxu0 %v310
    %v537 = vpop.f32.mrf.mxu0
    %v538 = vadd.f32 0.0, %v537
    %v539 = vpop.f32.mrf.mxu0
    %v540 = vadd.f32 0.0, %v539
    %541 = vmatprep.mubr.f32.mxu0 0.0
    %542 = vmatmul.mubr.f32.gmra.mxu0 %v313
    %v543 = vpop.f32.mrf.mxu0
    %v544 = vadd.f32 0.0, %v543
    %v545 = vpop.f32.mrf.mxu0
    %v546 = vadd.f32 0.0, %v545
    %547 = vmatprep.mubr.f32.mxu0 0.0
    %548 = vmatmul.mubr.f32.gmra.mxu0 %v316
    %v549 = vpop.f32.mrf.mxu0
    %v550 = vadd.f32 0.0, %v549
    %v551 = vpop.f32.mrf.mxu0
    %v552 = vadd.f32 0.0, %v551
    %553 = vmatprep.mubr.f32.mxu0 0.0
    %554 = vmatmul.mubr.f32.gmra.mxu0 %v319
    %v555 = vpop.f32.mrf.mxu0
    %v556 = vadd.f32 0.0, %v555
    %v557 = vpop.f32.mrf.mxu0
    %v558 = vadd.f32 0.0, %v557
    %559 = vmatprep.mubr.f32.mxu0 0.0
    %560 = vmatmul.mubr.f32.gmra.mxu0 %v322
    %v561 = vpop.f32.mrf.mxu0
    %v562 = vadd.f32 0.0, %v561
    %v563 = vpop.f32.mrf.mxu0
    %v564 = vadd.f32 0.0, %v563
    %565 = vmatprep.mubr.f32.mxu0 0.0
    %566 = vmatmul.mubr.f32.gmra.mxu0 %v325
    %v567 = vpop.f32.mrf.mxu0
    %v568 = vadd.f32 0.0, %v567
    %v569 = vpop.f32.mrf.mxu0
    %v570 = vadd.f32 0.0, %v569
    %571 = vmatprep.mubr.f32.mxu0 0.0
    %572 = vmatmul.mubr.f32.gmra.mxu0 %v328
    %v573 = vpop.f32.mrf.mxu0
    %v574 = vadd.f32 0.0, %v573
    %v575 = vpop.f32.mrf.mxu0
    %v576 = vadd.f32 0.0, %v575
    %577 = vmatprep.mubr.f32.mxu0 0.0
    %578 = vmatmul.mubr.f32.gmra.mxu0 %v331
    %v579 = vpop.f32.mrf.mxu0
    %v580 = vadd.f32 0.0, %v579
    %v581 = vpop.f32.mrf.mxu0
    %v582 = vadd.f32 0.0, %v581
    %583 = vmatprep.mubr.f32.mxu0 0.0
    %584 = vmatmul.mubr.f32.gmra.mxu0 %v334
    %v585 = vpop.f32.mrf.mxu0
    %v586 = vadd.f32 0.0, %v585
    %v587 = vpop.f32.mrf.mxu0
    %v588 = vadd.f32 0.0, %v587
    %589 = vmatprep.mubr.f32.mxu0 0.0
    %590 = vmatmul.mubr.f32.gmra.mxu0 %v337
    %v591 = vpop.f32.mrf.mxu0
    %v592 = vadd.f32 0.0, %v591
    %v593 = vpop.f32.mrf.mxu0
    %v594 = vadd.f32 0.0, %v593
    %595 = vdwg.mxu0
    %v596 = vmax.f32 %v406, %v418
    %v597 = vmax.f32 %v412, %v424
    %v598 = vmax.f32 %v596, %v430
    %v599 = vmax.f32 %v597, %v436
    %v600 = vmax.f32 %v598, %v442
    %v601 = vmax.f32 %v599, %v448
    %v602 = vmax.f32 %v600, %v454
    %v603 = vmax.f32 %v601, %v460
    %v604 = vmax.f32 %v602, %v466
    %v605 = vmax.f32 %v603, %v472
    %v606 = vmax.f32 %v604, %v478
    %v607 = vmax.f32 %v605, %v484
    %v608 = vmax.f32 %v606, %v490
    %v609 = vmax.f32 %v607, %v496
    %v610 = vmax.f32 %v608, %v502
    %v611 = vmax.f32 %v609, %v508
    %v612 = vmax.f32 %v610, %v514
    %v613 = vmax.f32 %v611, %v520
    %v614 = vmax.f32 %v612, %v526
    %v615 = vmax.f32 %v613, %v532
    %v616 = vmax.f32 %v614, %v538
    %v617 = vmax.f32 %v615, %v544
    %v618 = vmax.f32 %v616, %v550
    %v619 = vmax.f32 %v617, %v556
    %v620 = vmax.f32 %v618, %v562
    %v621 = vmax.f32 %v619, %v568
    %v622 = vmax.f32 %v620, %v574
    %v623 = vmax.f32 %v621, %v580
    %v624 = vmax.f32 %v622, %v586
    %v625 = vmax.f32 %v623, %v592
    %v626 = vmax.f32 %v624, %v625
    %v627 = vrot.slane %v626, 4
    %v628 = vmax.f32 %v626, %v627
    %v629 = vrot.slane %v628, 2
    %v630 = vmax.f32 %v628, %v629
    %v631 = vrot.slane %v630, 1
    %v632 = vmax.f32 %v630, %v631
    %v633 = vmax.f32 %v408, %v420
    %v634 = vmax.f32 %v414, %v426
    %v635 = vmax.f32 %v633, %v432
    %v636 = vmax.f32 %v634, %v438
    %v637 = vmax.f32 %v635, %v444
    %v638 = vmax.f32 %v636, %v450
    %v639 = vmax.f32 %v637, %v456
    %v640 = vmax.f32 %v638, %v462
    %v641 = vmax.f32 %v639, %v468
    %v642 = vmax.f32 %v640, %v474
    %v643 = vmax.f32 %v641, %v480
    %v644 = vmax.f32 %v642, %v486
    %v645 = vmax.f32 %v643, %v492
    %v646 = vmax.f32 %v644, %v498
    %v647 = vmax.f32 %v645, %v504
    %v648 = vmax.f32 %v646, %v510
    %v649 = vmax.f32 %v647, %v516
    %v650 = vmax.f32 %v648, %v522
    %v651 = vmax.f32 %v649, %v528
    %v652 = vmax.f32 %v650, %v534
    %v653 = vmax.f32 %v651, %v540
    %v654 = vmax.f32 %v652, %v546
    %v655 = vmax.f32 %v653, %v552
    %v656 = vmax.f32 %v654, %v558
    %v657 = vmax.f32 %v655, %v564
    %v658 = vmax.f32 %v656, %v570
    %v659 = vmax.f32 %v657, %v576
    %v660 = vmax.f32 %v658, %v582
    %v661 = vmax.f32 %v659, %v588
    %v662 = vmax.f32 %v660, %v594
    %v663 = vmax.f32 %v661, %v662
    %v664 = vrot.slane %v663, 4
    %v665 = vmax.f32 %v663, %v664
    %v666 = vrot.slane %v665, 2
    %v667 = vmax.f32 %v665, %v666
    %v668 = vrot.slane %v667, 1
    %v669 = vmax.f32 %v667, %v668
    %v670 = vsub.f32 %v406, %v632
    %v671 = vsub.f32 %v408, %v669
    %v672 = vsub.f32 %v412, %v632
    %v673 = vsub.f32 %v414, %v669
    %v674 = vsub.f32 %v418, %v632
    %v675 = vsub.f32 %v420, %v669
    %v676 = vsub.f32 %v424, %v632
    %v677 = vsub.f32 %v426, %v669
    %v678 = vsub.f32 %v430, %v632
    %v679 = vsub.f32 %v432, %v669
    %v680 = vsub.f32 %v436, %v632
    %v681 = vsub.f32 %v438, %v669
    %v682 = vsub.f32 %v442, %v632
    %v683 = vsub.f32 %v444, %v669
    %v684 = vsub.f32 %v448, %v632
    %v685 = vsub.f32 %v450, %v669
    %v686 = vsub.f32 %v454, %v632
    %v687 = vsub.f32 %v456, %v669
    %v688 = vsub.f32 %v460, %v632
    %v689 = vsub.f32 %v462, %v669
    %v690 = vsub.f32 %v466, %v632
    %v691 = vsub.f32 %v468, %v669
    %v692 = vsub.f32 %v472, %v632
    %v693 = vsub.f32 %v474, %v669
    %v694 = vsub.f32 %v478, %v632
    %v695 = vsub.f32 %v480, %v669
    %v696 = vsub.f32 %v484, %v632
    %v697 = vsub.f32 %v486, %v669
    %v698 = vsub.f32 %v490, %v632
    %v699 = vsub.f32 %v492, %v669
    %v700 = vsub.f32 %v496, %v632
    %v701 = vsub.f32 %v498, %v669
    %v702 = vsub.f32 %v502, %v632
    %v703 = vsub.f32 %v504, %v669
    %v704 = vsub.f32 %v508, %v632
    %v705 = vsub.f32 %v510, %v669
    %v706 = vsub.f32 %v514, %v632
    %v707 = vsub.f32 %v516, %v669
    %v708 = vsub.f32 %v520, %v632
    %v709 = vsub.f32 %v522, %v669
    %v710 = vsub.f32 %v526, %v632
    %v711 = vsub.f32 %v528, %v669
    %v712 = vsub.f32 %v532, %v632
    %v713 = vsub.f32 %v534, %v669
    %v714 = vsub.f32 %v538, %v632
    %v715 = vsub.f32 %v540, %v669
    %v716 = vsub.f32 %v544, %v632
    %v717 = vsub.f32 %v546, %v669
    %v718 = vsub.f32 %v550, %v632
    %v719 = vsub.f32 %v552, %v669
    %v720 = vsub.f32 %v556, %v632
    %v721 = vsub.f32 %v558, %v669
    %v722 = vsub.f32 %v562, %v632
    %v723 = vsub.f32 %v564, %v669
    %v724 = vsub.f32 %v568, %v632
    %v725 = vsub.f32 %v570, %v669
    %v726 = vsub.f32 %v574, %v632
    %v727 = vsub.f32 %v576, %v669
    %v728 = vsub.f32 %v580, %v632
    %v729 = vsub.f32 %v582, %v669
    %v730 = vsub.f32 %v586, %v632
    %v731 = vsub.f32 %v588, %v669
    %v732 = vsub.f32 %v592, %v632
    %v733 = vsub.f32 %v594, %v669
    %v734 = vmul.f32 %v670, 1.442695
    %v735 = vpow.pop %v734
    %v736 = vmul.f32 %v671, 1.442695
    %v737 = vpow.pop %v736
    %v738 = vmul.f32 %v672, 1.442695
    %v739 = vpow.pop %v738
    %v740 = vmul.f32 %v673, 1.442695
    %v741 = vpow.pop %v740
    %v742 = vmul.f32 %v674, 1.442695
    %v743 = vpow.pop %v742
    %v744 = vmul.f32 %v675, 1.442695
    %v745 = vpow.pop %v744
    %v746 = vmul.f32 %v676, 1.442695
    %v747 = vpow.pop %v746
    %v748 = vmul.f32 %v677, 1.442695
    %v749 = vpow.pop %v748
    %v750 = vmul.f32 %v678, 1.442695
    %v751 = vpow.pop %v750
    %v752 = vmul.f32 %v679, 1.442695
    %v753 = vpow.pop %v752
    %v754 = vmul.f32 %v680, 1.442695
    %v755 = vpow.pop %v754
    %v756 = vmul.f32 %v681, 1.442695
    %v757 = vpow.pop %v756
    %v758 = vmul.f32 %v682, 1.442695
    %v759 = vpow.pop %v758
    %v760 = vmul.f32 %v683, 1.442695
    %v761 = vpow.pop %v760
    %v762 = vmul.f32 %v684, 1.442695
    %v763 = vpow.pop %v762
    %v764 = vmul.f32 %v685, 1.442695
    %v765 = vpow.pop %v764
    %v766 = vmul.f32 %v686, 1.442695
    %v767 = vpow.pop %v766
    %v768 = vmul.f32 %v687, 1.442695
    %v769 = vpow.pop %v768
    %v770 = vmul.f32 %v688, 1.442695
    %v771 = vpow.pop %v770
    %v772 = vmul.f32 %v689, 1.442695
    %v773 = vpow.pop %v772
    %v774 = vmul.f32 %v690, 1.442695
    %v775 = vpow.pop %v774
    %v776 = vmul.f32 %v691, 1.442695
    %v777 = vpow.pop %v776
    %v778 = vmul.f32 %v692, 1.442695
    %v779 = vpow.pop %v778
    %v780 = vmul.f32 %v693, 1.442695
    %v781 = vpow.pop %v780
    %v782 = vmul.f32 %v694, 1.442695
    %v783 = vpow.pop %v782
    %v784 = vmul.f32 %v695, 1.442695
    %v785 = vpow.pop %v784
    %v786 = vmul.f32 %v696, 1.442695
    %v787 = vpow.pop %v786
    %v788 = vmul.f32 %v697, 1.442695
    %v789 = vpow.pop %v788
    %v790 = vmul.f32 %v698, 1.442695
    %v791 = vpow.pop %v790
    %v792 = vmul.f32 %v699, 1.442695
    %v793 = vpow.pop %v792
    %v794 = vmul.f32 %v700, 1.442695
    %v795 = vpow.pop %v794
    %v796 = vmul.f32 %v701, 1.442695
    %v797 = vpow.pop %v796
    %v798 = vmul.f32 %v702, 1.442695
    %v799 = vpow.pop %v798
    %v800 = vmul.f32 %v703, 1.442695
    %v801 = vpow.pop %v800
    %v802 = vmul.f32 %v704, 1.442695
    %v803 = vpow.pop %v802
    %v804 = vmul.f32 %v705, 1.442695
    %v805 = vpow.pop %v804
    %v806 = vmul.f32 %v706, 1.442695
    %v807 = vpow.pop %v806
    %v808 = vmul.f32 %v707, 1.442695
    %v809 = vpow.pop %v808
    %v810 = vmul.f32 %v708, 1.442695
    %v811 = vpow.pop %v810
    %v812 = vmul.f32 %v709, 1.442695
    %v813 = vpow.pop %v812
    %v814 = vmul.f32 %v710, 1.442695
    %v815 = vpow.pop %v814
    %v816 = vmul.f32 %v711, 1.442695
    %v817 = vpow.pop %v816
    %v818 = vmul.f32 %v712, 1.442695
    %v819 = vpow.pop %v818
    %v820 = vmul.f32 %v713, 1.442695
    %v821 = vpow.pop %v820
    %v822 = vmul.f32 %v714, 1.442695
    %v823 = vpow.pop %v822
    %v824 = vmul.f32 %v715, 1.442695
    %v825 = vpow.pop %v824
    %v826 = vmul.f32 %v716, 1.442695
    %v827 = vpow.pop %v826
    %v828 = vmul.f32 %v717, 1.442695
    %v829 = vpow.pop %v828
    %v830 = vmul.f32 %v718, 1.442695
    %v831 = vpow.pop %v830
    %v832 = vmul.f32 %v719, 1.442695
    %v833 = vpow.pop %v832
    %v834 = vmul.f32 %v720, 1.442695
    %v835 = vpow.pop %v834
    %v836 = vmul.f32 %v721, 1.442695
    %v837 = vpow.pop %v836
    %v838 = vmul.f32 %v722, 1.442695
    %v839 = vpow.pop %v838
    %v840 = vmul.f32 %v723, 1.442695
    %v841 = vpow.pop %v840
    %v842 = vmul.f32 %v724, 1.442695
    %v843 = vpow.pop %v842
    %v844 = vmul.f32 %v725, 1.442695
    %v845 = vpow.pop %v844
    %v846 = vmul.f32 %v726, 1.442695
    %v847 = vpow.pop %v846
    %v848 = vmul.f32 %v727, 1.442695
    %v849 = vpow.pop %v848
    %v850 = vmul.f32 %v728, 1.442695
    %v851 = vpow.pop %v850
    %v852 = vmul.f32 %v729, 1.442695
    %v853 = vpow.pop %v852
    %v854 = vmul.f32 %v730, 1.442695
    %v855 = vpow.pop %v854
    %v856 = vmul.f32 %v731, 1.442695
    %v857 = vpow.pop %v856
    %v858 = vmul.f32 %v732, 1.442695
    %v859 = vpow.pop %v858
    %v860 = vmul.f32 %v733, 1.442695
    %v861 = vpow.pop %v860
    %v862 = vadd.f32 %v735, %v739
    %v863 = vadd.f32 %v862, %v743
    %v864 = vadd.f32 %v863, %v747
    %v865 = vadd.f32 %v864, %v751
    %v866 = vadd.f32 %v865, %v755
    %v867 = vadd.f32 %v866, %v759
    %v868 = vadd.f32 %v867, %v763
    %v869 = vadd.f32 %v868, %v767
    %v870 = vadd.f32 %v869, %v771
    %v871 = vadd.f32 %v870, %v775
    %v872 = vadd.f32 %v871, %v779
    %v873 = vadd.f32 %v872, %v783
    %v874 = vadd.f32 %v873, %v787
    %v875 = vadd.f32 %v874, %v791
    %v876 = vadd.f32 %v875, %v795
    %v877 = vadd.f32 %v876, %v799
    %v878 = vadd.f32 %v877, %v803
    %v879 = vadd.f32 %v878, %v807
    %v880 = vadd.f32 %v879, %v811
    %v881 = vadd.f32 %v880, %v815
    %v882 = vadd.f32 %v881, %v819
    %v883 = vadd.f32 %v882, %v823
    %v884 = vadd.f32 %v883, %v827
    %v885 = vadd.f32 %v884, %v831
    %v886 = vadd.f32 %v885, %v835
    %v887 = vadd.f32 %v886, %v839
    %v888 = vadd.f32 %v887, %v843
    %v889 = vadd.f32 %v888, %v847
    %v890 = vadd.f32 %v889, %v851
    %v891 = vadd.f32 %v890, %v855
    %v892 = vadd.f32 %v891, %v859
    %v893 = vrot.slane %v892, 4
    %v894 = vadd.f32 %v892, %v893
    %v895 = vrot.slane %v894, 2
    %v896 = vadd.f32 %v894, %v895
    %v897 = vrot.slane %v896, 1
    %v898 = vadd.f32 %v896, %v897
    %v899 = vadd.f32 %v737, %v741
    %v900 = vadd.f32 %v899, %v745
    %v901 = vadd.f32 %v900, %v749
    %v902 = vadd.f32 %v901, %v753
    %v903 = vadd.f32 %v902, %v757
    %v904 = vadd.f32 %v903, %v761
    %v905 = vadd.f32 %v904, %v765
    %v906 = vadd.f32 %v905, %v769
    %v907 = vadd.f32 %v906, %v773
    %v908 = vadd.f32 %v907, %v777
    %v909 = vadd.f32 %v908, %v781
    %v910 = vadd.f32 %v909, %v785
    %v911 = vadd.f32 %v910, %v789
    %v912 = vadd.f32 %v911, %v793
    %v913 = vadd.f32 %v912, %v797
    %v914 = vadd.f32 %v913, %v801
    %v915 = vadd.f32 %v914, %v805
    %v916 = vadd.f32 %v915, %v809
    %v917 = vadd.f32 %v916, %v813
    %v918 = vadd.f32 %v917, %v817
    %v919 = vadd.f32 %v918, %v821
    %v920 = vadd.f32 %v919, %v825
    %v921 = vadd.f32 %v920, %v829
    %v922 = vadd.f32 %v921, %v833
    %v923 = vadd.f32 %v922, %v837
    %v924 = vadd.f32 %v923, %v841
    %v925 = vadd.f32 %v924, %v845
    %v926 = vadd.f32 %v925, %v849
    %v927 = vadd.f32 %v926, %v853
    %v928 = vadd.f32 %v927, %v857
    %v929 = vadd.f32 %v928, %v861
    %v930 = vrot.slane %v929, 4
    %v931 = vadd.f32 %v929, %v930
    %v932 = vrot.slane %v931, 2
    %v933 = vadd.f32 %v931, %v932
    %v934 = vrot.slane %v933, 1
    %v935 = vadd.f32 %v933, %v934
    %v936 = vrcp.pop %v898
    %v937 = vrcp.pop %v935
    %v938 = vmul.f32 %v168, %v936
    %v939 = vmul.f32 %v170, %v937
    %v940 = vmul.f32 %v174, %v936
    %v941 = vmul.f32 %v176, %v937
    %942 = vmatprep.subr.mxu0 %v797
    %943 = vmatpush1.xpose.msra.mxu0 %v795
    %944 = vmatprep.subr.mxu0 %v793
    %945 = vmatpush1.xpose.msra.mxu0 %v791
    %946 = vmatprep.subr.mxu0 %v789
    %947 = vmatpush1.xpose.msra.mxu0 %v787
    %948 = vmatprep.subr.mxu0 %v785
    %949 = vmatpush1.xpose.msra.mxu0 %v783
    %950 = vmatprep.subr.mxu0 %v781
    %951 = vmatpush1.xpose.msra.mxu0 %v779
    %952 = vmatprep.subr.mxu0 %v777
    %953 = vmatpush1.xpose.msra.mxu0 %v775
    %954 = vmatprep.subr.mxu0 %v773
    %955 = vmatpush1.xpose.msra.mxu0 %v771
    %956 = vmatprep.subr.mxu0 %v769
    %957 = vmatpush1.xpose.msra.mxu0 %v767
    %958 = vmatprep.subr.mxu0 %v765
    %959 = vmatpush1.xpose.msra.mxu0 %v763
    %960 = vmatprep.subr.mxu0 %v761
    %961 = vmatpush1.xpose.msra.mxu0 %v759
    %962 = vmatprep.subr.mxu0 %v757
    %963 = vmatpush1.xpose.msra.mxu0 %v755
    %964 = vmatprep.subr.mxu0 %v753
    %965 = vmatpush1.xpose.msra.mxu0 %v751
    %966 = vmatprep.subr.mxu0 %v749
    %967 = vmatpush1.xpose.msra.mxu0 %v747
    %968 = vmatprep.subr.mxu0 %v745
    %969 = vmatpush1.xpose.msra.mxu0 %v743
    %970 = vmatprep.subr.mxu0 %v741
    %971 = vmatpush1.xpose.msra.mxu0 %v739
    %972 = vmatprep.subr.mxu0 %v737
    %973 = vmatpush1.xpose.msra.mxu0 %v735
    %974 = vmatprep.subr.mxu0 %v861
    %975 = vmatpush2.xpose.msra.mxu0 %v859
    %976 = vmatprep.subr.mxu0 %v857
    %977 = vmatpush2.xpose.msra.mxu0 %v855
    %978 = vmatprep.subr.mxu0 %v853
    %979 = vmatpush2.xpose.msra.mxu0 %v851
    %980 = vmatprep.subr.mxu0 %v849
    %981 = vmatpush2.xpose.msra.mxu0 %v847
    %982 = vmatprep.subr.mxu0 %v845
    %983 = vmatpush2.xpose.msra.mxu0 %v843
    %984 = vmatprep.subr.mxu0 %v841
    %985 = vmatpush2.xpose.msra.mxu0 %v839
    %986 = vmatprep.subr.mxu0 %v837
    %987 = vmatpush2.xpose.msra.mxu0 %v835
    %988 = vmatprep.subr.mxu0 %v833
    %989 = vmatpush2.xpose.msra.mxu0 %v831
    %990 = vmatprep.subr.mxu0 %v829
    %991 = vmatpush2.xpose.msra.mxu0 %v827
    %992 = vmatprep.subr.mxu0 %v825
    %993 = vmatpush2.xpose.msra.mxu0 %v823
    %994 = vmatprep.subr.mxu0 %v821
    %995 = vmatpush2.xpose.msra.mxu0 %v819
    %996 = vmatprep.subr.mxu0 %v817
    %997 = vmatpush2.xpose.msra.mxu0 %v815
    %998 = vmatprep.subr.mxu0 %v813
    %999 = vmatpush2.xpose.msra.mxu0 %v811
    %1000 = vmatprep.subr.mxu0 %v809
    %1001 = vmatpush2.xpose.msra.mxu0 %v807
    %1002 = vmatprep.subr.mxu0 %v805
    %1003 = vmatpush2.xpose.msra.mxu0 %v803
    %1004 = vmatprep.subr.mxu0 %v801
    %1005 = vmatpush2.xpose.msra.mxu0 %v799
    %1006 = vmatprep.mubr.f32.mxu0 %v939
    %1007 = vmatmul.mubr.f32.gmra.mxu0 %v938
    %v1008 = vpop.f32.mrf.mxu0
    %v1009 = vadd.f32 0.0, %v1008
    %v1010 = vpop.f32.mrf.mxu0
    %v1011 = vadd.f32 0.0, %v1010
    %1012 = vmatprep.mubr.f32.mxu0 %v941
    %1013 = vmatmul.mubr.f32.gmra.mxu0 %v940
    %v1014 = vpop.f32.mrf.mxu0
    %v1015 = vadd.f32 0.0, %v1014
    %v1016 = vpop.f32.mrf.mxu0
    %v1017 = vadd.f32 0.0, %v1016
    %1018 = vdwg.mxu0
    %v1019 = vld [vmem:[%s4] sm:$0xff]
    %v1020 = vld [vmem:[%s4 + $0x8] sm:$0xff]
    %v1021 = vld [vmem:[%s4 + $0x10] sm:$0xff]
    %v1022 = vld [vmem:[%s4 + $0x18] sm:$0xff]
    %v1023 = vld [vmem:[%s5] sm:$0xff]
    %v1024 = vld [vmem:[%s5 + $0x8] sm:$0xff]
    %v1025 = vld [vmem:[%s5 + $0x10] sm:$0xff]
    %v1026 = vld [vmem:[%s5 + $0x18] sm:$0xff]
    %1028 = vset.pattern.permute.xlu0 0
    %1029 = vperm.xlu0 %1028, %v1023
    %v1030 = vpop.permute.xlu0 %1029
    %1033 = vset.pattern.permute.xlu0 0
    %1034 = vperm.xlu0 %1033, %v1024
    %v1035 = vpop.permute.xlu0 %1034
    %1038 = vset.pattern.permute.xlu0 0
    %1039 = vperm.xlu0 %1038, %v1025
    %v1040 = vpop.permute.xlu0 %1039
    %1043 = vset.pattern.permute.xlu0 0
    %1044 = vperm.xlu0 %1043, %v1026
    %v1045 = vpop.permute.xlu0 %1044
    %vm1047 = vcmask 130048
    %v1049 = vsel %vm1047, %v1019, 0
    %v1052 = vsel %vm1047, %v1020, 0
    %v1055 = vsel %vm1047, %v1021, 0
    %v1058 = vsel %vm1047, %v1022, 0
    %1060 = vmatprep.subr.mxu0 0.0
    %1061 = vmatpush1.msra.mxu0 0.0
    %1062 = vmatprep.subr.mxu0 0.0
    %1063 = vmatpush1.msra.mxu0 0.0
    %1064 = vmatprep.subr.mxu0 0.0
    %1065 = vmatpush1.msra.mxu0 0.0
    %1066 = vmatprep.subr.mxu0 0.0
    %1067 = vmatpush1.msra.mxu0 0.0
    %1068 = vmatprep.subr.mxu0 0.0
    %1069 = vmatpush1.msra.mxu0 0.0
    %1070 = vmatprep.subr.mxu0 0.0
    %1071 = vmatpush1.msra.mxu0 0.0
    %1072 = vmatprep.subr.mxu0 0.0
    %1073 = vmatpush1.msra.mxu0 0.0
    %1074 = vmatprep.subr.mxu0 0.0
    %1075 = vmatpush1.msra.mxu0 0.0
    %1076 = vmatprep.subr.mxu0 0.0
    %1077 = vmatpush1.msra.mxu0 0.0
    %1078 = vmatprep.subr.mxu0 0.0
    %1079 = vmatpush1.msra.mxu0 0.0
    %1080 = vmatprep.subr.mxu0 0.0
    %1081 = vmatpush1.msra.mxu0 0.0
    %1082 = vmatprep.subr.mxu0 0.0
    %1083 = vmatpush1.msra.mxu0 0.0
    %1084 = vmatprep.subr.mxu0 0.0
    %1085 = vmatpush1.msra.mxu0 0.0
    %1086 = vmatprep.subr.mxu0 0.0
    %1087 = vmatpush1.msra.mxu0 0.0
    %1088 = vmatprep.subr.mxu0 %v1017
    %1089 = vmatpush1.msra.mxu0 %v1015
    %1090 = vmatprep.subr.mxu0 %v1011
    %1091 = vmatpush1.msra.mxu0 %v1009
    %1092 = vmatprep.subr.mxu0 0.0
    %1093 = vmatpush2.msra.mxu0 0.0
    %1094 = vmatprep.subr.mxu0 0.0
    %1095 = vmatpush2.msra.mxu0 0.0
    %1096 = vmatprep.subr.mxu0 0.0
    %1097 = vmatpush2.msra.mxu0 0.0
    %1098 = vmatprep.subr.mxu0 0.0
    %1099 = vmatpush2.msra.mxu0 0.0
    %1100 = vmatprep.subr.mxu0 0.0
    %1101 = vmatpush2.msra.mxu0 0.0
    %1102 = vmatprep.subr.mxu0 0.0
    %1103 = vmatpush2.msra.mxu0 0.0
    %1104 = vmatprep.subr.mxu0 0.0
    %1105 = vmatpush2.msra.mxu0 0.0
    %1106 = vmatprep.subr.mxu0 0.0
    %1107 = vmatpush2.msra.mxu0 0.0
    %1108 = vmatprep.subr.mxu0 0.0
    %1109 = vmatpush2.msra.mxu0 0.0
    %1110 = vmatprep.subr.mxu0 0.0
    %1111 = vmatpush2.msra.mxu0 0.0
    %1112 = vmatprep.subr.mxu0 0.0
    %1113 = vmatpush2.msra.mxu0 0.0
    %1114 = vmatprep.subr.mxu0 0.0
    %1115 = vmatpush2.msra.mxu0 0.0
    %1116 = vmatprep.subr.mxu0 0.0
    %1117 = vmatpush2.msra.mxu0 0.0
    %1118 = vmatprep.subr.mxu0 0.0
    %1119 = vmatpush2.msra.mxu0 0.0
    %1120 = vmatprep.subr.mxu0 0.0
    %1121 = vmatpush2.msra.mxu0 0.0
    %1122 = vmatprep.subr.mxu0 0.0
    %1123 = vmatpush2.msra.mxu0 0.0
    %1124 = vmatprep.mubr.f32.mxu0 0.0
    %1125 = vmatmul.mubr.f32.gmra.mxu0 %v1049
    %v1126 = vpop.f32.mrf.mxu0
    %v1127 = vadd.f32 %v1030, %v1126
    %v1128 = vpop.f32.mrf.mxu0
    %v1129 = vadd.f32 %v1030, %v1128
    %1130 = vmatprep.mubr.f32.mxu0 0.0
    %1131 = vmatmul.mubr.f32.gmra.mxu0 %v1052
    %v1132 = vpop.f32.mrf.mxu0
    %v1133 = vadd.f32 %v1035, %v1132
    %v1134 = vpop.f32.mrf.mxu0
    %v1135 = vadd.f32 %v1035, %v1134
    %1136 = vmatprep.mubr.f32.mxu0 0.0
    %1137 = vmatmul.mubr.f32.gmra.mxu0 %v1055
    %v1138 = vpop.f32.mrf.mxu0
    %v1139 = vadd.f32 %v1040, %v1138
    %v1140 = vpop.f32.mrf.mxu0
    %v1141 = vadd.f32 %v1040, %v1140
    %1142 = vmatprep.mubr.f32.mxu0 0.0
    %1143 = vmatmul.mubr.f32.gmra.mxu0 %v1058
    %v1144 = vpop.f32.mrf.mxu0
    %v1145 = vadd.f32 %v1045, %v1144
    %v1146 = vpop.f32.mrf.mxu0
    %v1147 = vadd.f32 %v1045, %v1146
    %1148 = vdwg.mxu0
    %v1149 = vstv %s39
    %v1150 = vmul.f32 %v1149, %v1127
    %v1151 = vmul.f32 %v1149, %v1129
    %v1152 = vmul.f32 %v1149, %v1133
    %v1153 = vmul.f32 %v1149, %v1135
    %v1154 = vmul.f32 %v1149, %v1139
    %v1155 = vmul.f32 %v1149, %v1141
    %v1156 = vmul.f32 %v1149, %v1145
    %v1157 = vmul.f32 %v1149, %v1147
    %v1158 = vadd.f32 %v40, %v1150
    %v1159 = vadd.f32 %v41, %v1151
    %v1160 = vadd.f32 %v42, %v1152
    %v1161 = vadd.f32 %v43, %v1153
    %v1162 = vadd.f32 %v44, %v1154
    %v1163 = vadd.f32 %v45, %v1155
    %v1164 = vadd.f32 %v46, %v1156
    %v1165 = vadd.f32 %v47, %v1157
    %1166 = vst [vmem:[#allocation6] sm:$0xff] %v1158
    %1167 = vst [vmem:[#allocation6 + $0x8] sm:$0xff] %v1159
    %1168 = vst [vmem:[#allocation6 + $0x10] sm:$0xff] %v1160
    %1169 = vst [vmem:[#allocation6 + $0x18] sm:$0xff] %v1161
    %1170 = vst [vmem:[#allocation6 + $0x20] sm:$0xff] %v1162
    %1171 = vst [vmem:[#allocation6 + $0x28] sm:$0xff] %v1163
    %1172 = vst [vmem:[#allocation6 + $0x30] sm:$0xff] %v1164
    %1173 = vst [vmem:[#allocation6 + $0x38] sm:$0xff] %v1165
    %s1174 = scalar_lea.vmem [#allocation3], 64
    %v1175 = vld [vmem:[%s1174] sm:$0xff]
    %v1176 = vld [vmem:[%s1174 + $0x8] sm:$0xff]
    %v1177 = vld [vmem:[%s1174 + $0x10] sm:$0xff]
    %v1178 = vld [vmem:[%s1174 + $0x18] sm:$0xff]
    %v1179 = vld [vmem:[%s1174 + $0x20] sm:$0xff]
    %v1180 = vld [vmem:[%s1174 + $0x28] sm:$0xff]
    %v1181 = vld [vmem:[%s1174 + $0x30] sm:$0xff]
    %v1182 = vld [vmem:[%s1174 + $0x38] sm:$0xff]
    %v1183 = vld [vmem:[%s2] sm:$0xff]
    %v1184 = vld [vmem:[%s2 + $0x8] sm:$0xff]
    %v1185 = vld [vmem:[%s2 + $0x10] sm:$0xff]
    %v1186 = vld [vmem:[%s2 + $0x18] sm:$0xff]
    %v1187 = vld [vmem:[%s3] sm:$0xff]
    %v1188 = vld [vmem:[%s3 + $0x8] sm:$0xff]
    %v1189 = vld [vmem:[%s3 + $0x10] sm:$0xff]
    %v1190 = vld [vmem:[%s3 + $0x18] sm:$0xff]
    %1192 = vset.pattern.permute.xlu0 0
    %1193 = vperm.xlu0 %1192, %v1187
    %v1194 = vpop.permute.xlu0 %1193
    %1197 = vset.pattern.permute.xlu0 0
    %1198 = vperm.xlu0 %1197, %v1188
    %v1199 = vpop.permute.xlu0 %1198
    %1202 = vset.pattern.permute.xlu0 0
    %1203 = vperm.xlu0 %1202, %v1189
    %v1204 = vpop.permute.xlu0 %1203
    %1207 = vset.pattern.permute.xlu0 0
    %1208 = vperm.xlu0 %1207, %v1190
    %v1209 = vpop.permute.xlu0 %1208
    %v1212 = vsel %vm76, %v1183, 0
    %v1215 = vsel %vm76, %v1184, 0
    %v1218 = vsel %vm76, %v1185, 0
    %v1221 = vsel %vm76, %v1186, 0
    %1223 = vmatprep.subr.mxu0 0.0
    %1224 = vmatpush1.msra.mxu0 0.0
    %1225 = vmatprep.subr.mxu0 0.0
    %1226 = vmatpush1.msra.mxu0 0.0
    %1227 = vmatprep.subr.mxu0 0.0
    %1228 = vmatpush1.msra.mxu0 0.0
    %1229 = vmatprep.subr.mxu0 0.0
    %1230 = vmatpush1.msra.mxu0 0.0
    %1231 = vmatprep.subr.mxu0 0.0
    %1232 = vmatpush1.msra.mxu0 0.0
    %1233 = vmatprep.subr.mxu0 0.0
    %1234 = vmatpush1.msra.mxu0 0.0
    %1235 = vmatprep.subr.mxu0 0.0
    %1236 = vmatpush1.msra.mxu0 0.0
    %1237 = vmatprep.subr.mxu0 0.0
    %1238 = vmatpush1.msra.mxu0 0.0
    %1239 = vmatprep.subr.mxu0 0.0
    %1240 = vmatpush1.msra.mxu0 0.0
    %1241 = vmatprep.subr.mxu0 0.0
    %1242 = vmatpush1.msra.mxu0 0.0
    %1243 = vmatprep.subr.mxu0 0.0
    %1244 = vmatpush1.msra.mxu0 0.0
    %1245 = vmatprep.subr.mxu0 0.0
    %1246 = vmatpush1.msra.mxu0 0.0
    %1247 = vmatprep.subr.mxu0 %v1182
    %1248 = vmatpush1.msra.mxu0 %v1181
    %1249 = vmatprep.subr.mxu0 %v1180
    %1250 = vmatpush1.msra.mxu0 %v1179
    %1251 = vmatprep.subr.mxu0 %v1178
    %1252 = vmatpush1.msra.mxu0 %v1177
    %1253 = vmatprep.subr.mxu0 %v1176
    %1254 = vmatpush1.msra.mxu0 %v1175
    %1255 = vmatprep.subr.mxu0 0.0
    %1256 = vmatpush2.msra.mxu0 0.0
    %1257 = vmatprep.subr.mxu0 0.0
    %1258 = vmatpush2.msra.mxu0 0.0
    %1259 = vmatprep.subr.mxu0 0.0
    %1260 = vmatpush2.msra.mxu0 0.0
    %1261 = vmatprep.subr.mxu0 0.0
    %1262 = vmatpush2.msra.mxu0 0.0
    %1263 = vmatprep.subr.mxu0 0.0
    %1264 = vmatpush2.msra.mxu0 0.0
    %1265 = vmatprep.subr.mxu0 0.0
    %1266 = vmatpush2.msra.mxu0 0.0
    %1267 = vmatprep.subr.mxu0 0.0
    %1268 = vmatpush2.msra.mxu0 0.0
    %1269 = vmatprep.subr.mxu0 0.0
    %1270 = vmatpush2.msra.mxu0 0.0
    %1271 = vmatprep.subr.mxu0 0.0
    %1272 = vmatpush2.msra.mxu0 0.0
    %1273 = vmatprep.subr.mxu0 0.0
    %1274 = vmatpush2.msra.mxu0 0.0
    %1275 = vmatprep.subr.mxu0 0.0
    %1276 = vmatpush2.msra.mxu0 0.0
    %1277 = vmatprep.subr.mxu0 0.0
    %1278 = vmatpush2.msra.mxu0 0.0
    %1279 = vmatprep.subr.mxu0 0.0
    %1280 = vmatpush2.msra.mxu0 0.0
    %1281 = vmatprep.subr.mxu0 0.0
    %1282 = vmatpush2.msra.mxu0 0.0
    %1283 = vmatprep.subr.mxu0 0.0
    %1284 = vmatpush2.msra.mxu0 0.0
    %1285 = vmatprep.subr.mxu0 0.0
    %1286 = vmatpush2.msra.mxu0 0.0
    %1287 = vmatprep.mubr.f32.mxu0 0.0
    %1288 = vmatmul.mubr.f32.gmra.mxu0 %v1212
    %v1289 = vpop.f32.mrf.mxu0
    %v1290 = vadd.f32 %v1194, %v1289
    %v1291 = vpop.f32.mrf.mxu0
    %v1292 = vadd.f32 %v1194, %v1291
    %1293 = vmatprep.mubr.f32.mxu0 0.0
    %1294 = vmatmul.mubr.f32.gmra.mxu0 %v1215
    %v1295 = vpop.f32.mrf.mxu0
    %v1296 = vadd.f32 %v1199, %v1295
    %v1297 = vpop.f32.mrf.mxu0
    %v1298 = vadd.f32 %v1199, %v1297
    %1299 = vmatprep.mubr.f32.mxu0 0.0
    %1300 = vmatmul.mubr.f32.gmra.mxu0 %v1218
    %v1301 = vpop.f32.mrf.mxu0
    %v1302 = vadd.f32 %v1204, %v1301
    %v1303 = vpop.f32.mrf.mxu0
    %v1304 = vadd.f32 %v1204, %v1303
    %1305 = vmatprep.mubr.f32.mxu0 0.0
    %1306 = vmatmul.mubr.f32.gmra.mxu0 %v1221
    %v1307 = vpop.f32.mrf.mxu0
    %v1308 = vadd.f32 %v1209, %v1307
    %v1309 = vpop.f32.mrf.mxu0
    %v1310 = vadd.f32 %v1209, %v1309
    %1311 = vdwg.mxu0
    %1312 = vxpose.xlu0.b32.start [1/16] %v1296, 128
    %1313 = vxpose.xlu0.b32.cont [2/16] 0.0, 128
    %1314 = vxpose.xlu0.b32.cont [3/16] 0.0, 128
    %1315 = vxpose.xlu0.b32.cont [4/16] 0.0, 128
    %1316 = vxpose.xlu0.b32.cont [5/16] 0.0, 128
    %1317 = vxpose.xlu0.b32.cont [6/16] 0.0, 128
    %1318 = vxpose.xlu0.b32.cont [7/16] 0.0, 128
    %1319 = vxpose.xlu0.b32.cont [8/16] 0.0, 128
    %1320 = vxpose.xlu0.b32.cont [9/16] 0.0, 128
    %1321 = vxpose.xlu0.b32.cont [10/16] 0.0, 128
    %1322 = vxpose.xlu0.b32.cont [11/16] 0.0, 128
    %1323 = vxpose.xlu0.b32.cont [12/16] 0.0, 128
    %1324 = vxpose.xlu0.b32.cont [13/16] 0.0, 128
    %1325 = vxpose.xlu0.b32.cont [14/16] 0.0, 128
    %1326 = vxpose.xlu0.b32.cont [15/16] 0.0, 128
    %1327 = vxpose.xlu0.b32.end [16/16] 0.0, 128
    %v1328 = vpop.trf.xlu0
    %v1329 = vpop.trf.xlu0
    %v1330 = vpop.trf.xlu0
    %v1331 = vpop.trf.xlu0
    %v1332 = vpop.trf.xlu0
    %v1333 = vpop.trf.xlu0
    %v1334 = vpop.trf.xlu0
    %v1335 = vpop.trf.xlu0
    %v1336 = vpop.trf.xlu0
    %v1337 = vpop.trf.xlu0
    %v1338 = vpop.trf.xlu0
    %v1339 = vpop.trf.xlu0
    %v1340 = vpop.trf.xlu0
    %v1341 = vpop.trf.xlu0
    %v1342 = vpop.trf.xlu0
    %v1343 = vpop.trf.xlu0
    %1344 = vxpose.xlu0.b32.start [1/16] %v1298, 128
    %1345 = vxpose.xlu0.b32.cont [2/16] 0.0, 128
    %1346 = vxpose.xlu0.b32.cont [3/16] 0.0, 128
    %1347 = vxpose.xlu0.b32.cont [4/16] 0.0, 128
    %1348 = vxpose.xlu0.b32.cont [5/16] 0.0, 128
    %1349 = vxpose.xlu0.b32.cont [6/16] 0.0, 128
    %1350 = vxpose.xlu0.b32.cont [7/16] 0.0, 128
    %1351 = vxpose.xlu0.b32.cont [8/16] 0.0, 128
    %1352 = vxpose.xlu0.b32.cont [9/16] 0.0, 128
    %1353 = vxpose.xlu0.b32.cont [10/16] 0.0, 128
    %1354 = vxpose.xlu0.b32.cont [11/16] 0.0, 128
    %1355 = vxpose.xlu0.b32.cont [12/16] 0.0, 128
    %1356 = vxpose.xlu0.b32.cont [13/16] 0.0, 128
    %1357 = vxpose.xlu0.b32.cont [14/16] 0.0, 128
    %1358 = vxpose.xlu0.b32.cont [15/16] 0.0, 128
    %1359 = vxpose.xlu0.b32.end [16/16] 0.0, 128
    %v1360 = vpop.trf.xlu0
    %v1361 = vpop.trf.xlu0
    %v1362 = vpop.trf.xlu0
    %v1363 = vpop.trf.xlu0
    %v1364 = vpop.trf.xlu0
    %v1365 = vpop.trf.xlu0
    %v1366 = vpop.trf.xlu0
    %v1367 = vpop.trf.xlu0
    %v1368 = vpop.trf.xlu0
    %v1369 = vpop.trf.xlu0
    %v1370 = vpop.trf.xlu0
    %v1371 = vpop.trf.xlu0
    %v1372 = vpop.trf.xlu0
    %v1373 = vpop.trf.xlu0
    %v1374 = vpop.trf.xlu0
    %v1375 = vpop.trf.xlu0
    %v1377 = vsel %vm242, %v1328, 0
    %v1380 = vsel %vm242, %v1329, 0
    %v1383 = vsel %vm242, %v1330, 0
    %v1386 = vsel %vm242, %v1331, 0
    %v1389 = vsel %vm242, %v1332, 0
    %v1392 = vsel %vm242, %v1333, 0
    %v1395 = vsel %vm242, %v1334, 0
    %v1398 = vsel %vm242, %v1335, 0
    %v1401 = vsel %vm242, %v1336, 0
    %v1404 = vsel %vm242, %v1337, 0
    %v1407 = vsel %vm242, %v1338, 0
    %v1410 = vsel %vm242, %v1339, 0
    %v1413 = vsel %vm242, %v1340, 0
    %v1416 = vsel %vm242, %v1341, 0
    %v1419 = vsel %vm242, %v1342, 0
    %v1422 = vsel %vm242, %v1343, 0
    %v1425 = vsel %vm242, %v1360, 0
    %v1428 = vsel %vm242, %v1361, 0
    %v1431 = vsel %vm242, %v1362, 0
    %v1434 = vsel %vm242, %v1363, 0
    %v1437 = vsel %vm242, %v1364, 0
    %v1440 = vsel %vm242, %v1365, 0
    %v1443 = vsel %vm242, %v1366, 0
    %v1446 = vsel %vm242, %v1367, 0
    %v1449 = vsel %vm242, %v1368, 0
    %v1452 = vsel %vm242, %v1369, 0
    %v1455 = vsel %vm242, %v1370, 0
    %v1458 = vsel %vm242, %v1371, 0
    %v1461 = vsel %vm242, %v1372, 0
    %v1464 = vsel %vm242, %v1373, 0
    %v1467 = vsel %vm242, %v1374, 0
    %v1470 = vsel %vm242, %v1375, 0
    %1472 = vmatprep.subr.mxu0 0.0
    %1473 = vmatpush1.msra.mxu0 0.0
    %1474 = vmatprep.subr.mxu0 0.0
    %1475 = vmatpush1.msra.mxu0 0.0
    %1476 = vmatprep.subr.mxu0 0.0
    %1477 = vmatpush1.msra.mxu0 0.0
    %1478 = vmatprep.subr.mxu0 0.0
    %1479 = vmatpush1.msra.mxu0 0.0
    %1480 = vmatprep.subr.mxu0 0.0
    %1481 = vmatpush1.msra.mxu0 0.0
    %1482 = vmatprep.subr.mxu0 0.0
    %1483 = vmatpush1.msra.mxu0 0.0
    %1484 = vmatprep.subr.mxu0 0.0
    %1485 = vmatpush1.msra.mxu0 0.0
    %1486 = vmatprep.subr.mxu0 0.0
    %1487 = vmatpush1.msra.mxu0 0.0
    %1488 = vmatprep.subr.mxu0 0.0
    %1489 = vmatpush1.msra.mxu0 0.0
    %1490 = vmatprep.subr.mxu0 0.0
    %1491 = vmatpush1.msra.mxu0 0.0
    %1492 = vmatprep.subr.mxu0 0.0
    %1493 = vmatpush1.msra.mxu0 0.0
    %1494 = vmatprep.subr.mxu0 0.0
    %1495 = vmatpush1.msra.mxu0 0.0
    %1496 = vmatprep.subr.mxu0 0.0
    %1497 = vmatpush1.msra.mxu0 0.0
    %1498 = vmatprep.subr.mxu0 0.0
    %1499 = vmatpush1.msra.mxu0 0.0
    %1500 = vmatprep.subr.mxu0 0.0
    %1501 = vmatpush1.msra.mxu0 0.0
    %1502 = vmatprep.subr.mxu0 %v1292
    %1503 = vmatpush1.msra.mxu0 %v1290
    %1504 = vmatprep.subr.mxu0 0.0
    %1505 = vmatpush2.msra.mxu0 0.0
    %1506 = vmatprep.subr.mxu0 0.0
    %1507 = vmatpush2.msra.mxu0 0.0
    %1508 = vmatprep.subr.mxu0 0.0
    %1509 = vmatpush2.msra.mxu0 0.0
    %1510 = vmatprep.subr.mxu0 0.0
    %1511 = vmatpush2.msra.mxu0 0.0
    %1512 = vmatprep.subr.mxu0 0.0
    %1513 = vmatpush2.msra.mxu0 0.0
    %1514 = vmatprep.subr.mxu0 0.0
    %1515 = vmatpush2.msra.mxu0 0.0
    %1516 = vmatprep.subr.mxu0 0.0
    %1517 = vmatpush2.msra.mxu0 0.0
    %1518 = vmatprep.subr.mxu0 0.0
    %1519 = vmatpush2.msra.mxu0 0.0
    %1520 = vmatprep.subr.mxu0 0.0
    %1521 = vmatpush2.msra.mxu0 0.0
    %1522 = vmatprep.subr.mxu0 0.0
    %1523 = vmatpush2.msra.mxu0 0.0
    %1524 = vmatprep.subr.mxu0 0.0
    %1525 = vmatpush2.msra.mxu0 0.0
    %1526 = vmatprep.subr.mxu0 0.0
    %1527 = vmatpush2.msra.mxu0 0.0
    %1528 = vmatprep.subr.mxu0 0.0
    %1529 = vmatpush2.msra.mxu0 0.0
    %1530 = vmatprep.subr.mxu0 0.0
    %1531 = vmatpush2.msra.mxu0 0.0
    %1532 = vmatprep.subr.mxu0 0.0
    %1533 = vmatpush2.msra.mxu0 0.0
    %1534 = vmatprep.subr.mxu0 0.0
    %1535 = vmatpush2.msra.mxu0 0.0
    %1536 = vmatprep.mubr.f32.mxu0 0.0
    %1537 = vmatmul.mubr.f32.gmra.mxu0 %v1377
    %v1538 = vpop.f32.mrf.mxu0
    %v1539 = vadd.f32 0.0, %v1538
    %v1540 = vpop.f32.mrf.mxu0
    %v1541 = vadd.f32 0.0, %v1540
    %1542 = vmatprep.mubr.f32.mxu0 0.0
    %1543 = vmatmul.mubr.f32.gmra.mxu0 %v1380
    %v1544 = vpop.f32.mrf.mxu0
    %v1545 = vadd.f32 0.0, %v1544
    %v1546 = vpop.f32.mrf.mxu0
    %v1547 = vadd.f32 0.0, %v1546
    %1548 = vmatprep.mubr.f32.mxu0 0.0
    %1549 = vmatmul.mubr.f32.gmra.mxu0 %v1383
    %v1550 = vpop.f32.mrf.mxu0
    %v1551 = vadd.f32 0.0, %v1550
    %v1552 = vpop.f32.mrf.mxu0
    %v1553 = vadd.f32 0.0, %v1552
    %1554 = vmatprep.mubr.f32.mxu0 0.0
    %1555 = vmatmul.mubr.f32.gmra.mxu0 %v1386
    %v1556 = vpop.f32.mrf.mxu0
    %v1557 = vadd.f32 0.0, %v1556
    %v1558 = vpop.f32.mrf.mxu0
    %v1559 = vadd.f32 0.0, %v1558
    %1560 = vmatprep.mubr.f32.mxu0 0.0
    %1561 = vmatmul.mubr.f32.gmra.mxu0 %v1389
    %v1562 = vpop.f32.mrf.mxu0
    %v1563 = vadd.f32 0.0, %v1562
    %v1564 = vpop.f32.mrf.mxu0
    %v1565 = vadd.f32 0.0, %v1564
    %1566 = vmatprep.mubr.f32.mxu0 0.0
    %1567 = vmatmul.mubr.f32.gmra.mxu0 %v1392
    %v1568 = vpop.f32.mrf.mxu0
    %v1569 = vadd.f32 0.0, %v1568
    %v1570 = vpop.f32.mrf.mxu0
    %v1571 = vadd.f32 0.0, %v1570
    %1572 = vmatprep.mubr.f32.mxu0 0.0
    %1573 = vmatmul.mubr.f32.gmra.mxu0 %v1395
    %v1574 = vpop.f32.mrf.mxu0
    %v1575 = vadd.f32 0.0, %v1574
    %v1576 = vpop.f32.mrf.mxu0
    %v1577 = vadd.f32 0.0, %v1576
    %1578 = vmatprep.mubr.f32.mxu0 0.0
    %1579 = vmatmul.mubr.f32.gmra.mxu0 %v1398
    %v1580 = vpop.f32.mrf.mxu0
    %v1581 = vadd.f32 0.0, %v1580
    %v1582 = vpop.f32.mrf.mxu0
    %v1583 = vadd.f32 0.0, %v1582
    %1584 = vmatprep.mubr.f32.mxu0 0.0
    %1585 = vmatmul.mubr.f32.gmra.mxu0 %v1401
    %v1586 = vpop.f32.mrf.mxu0
    %v1587 = vadd.f32 0.0, %v1586
    %v1588 = vpop.f32.mrf.mxu0
    %v1589 = vadd.f32 0.0, %v1588
    %1590 = vmatprep.mubr.f32.mxu0 0.0
    %1591 = vmatmul.mubr.f32.gmra.mxu0 %v1404
    %v1592 = vpop.f32.mrf.mxu0
    %v1593 = vadd.f32 0.0, %v1592
    %v1594 = vpop.f32.mrf.mxu0
    %v1595 = vadd.f32 0.0, %v1594
    %1596 = vmatprep.mubr.f32.mxu0 0.0
    %1597 = vmatmul.mubr.f32.gmra.mxu0 %v1407
    %v1598 = vpop.f32.mrf.mxu0
    %v1599 = vadd.f32 0.0, %v1598
    %v1600 = vpop.f32.mrf.mxu0
    %v1601 = vadd.f32 0.0, %v1600
    %1602 = vmatprep.mubr.f32.mxu0 0.0
    %1603 = vmatmul.mubr.f32.gmra.mxu0 %v1410
    %v1604 = vpop.f32.mrf.mxu0
    %v1605 = vadd.f32 0.0, %v1604
    %v1606 = vpop.f32.mrf.mxu0
    %v1607 = vadd.f32 0.0, %v1606
    %1608 = vmatprep.mubr.f32.mxu0 0.0
    %1609 = vmatmul.mubr.f32.gmra.mxu0 %v1413
    %v1610 = vpop.f32.mrf.mxu0
    %v1611 = vadd.f32 0.0, %v1610
    %v1612 = vpop.f32.mrf.mxu0
    %v1613 = vadd.f32 0.0, %v1612
    %1614 = vmatprep.mubr.f32.mxu0 0.0
    %1615 = vmatmul.mubr.f32.gmra.mxu0 %v1416
    %v1616 = vpop.f32.mrf.mxu0
    %v1617 = vadd.f32 0.0, %v1616
    %v1618 = vpop.f32.mrf.mxu0
    %v1619 = vadd.f32 0.0, %v1618
    %1620 = vmatprep.mubr.f32.mxu0 0.0
    %1621 = vmatmul.mubr.f32.gmra.mxu0 %v1419
    %v1622 = vpop.f32.mrf.mxu0
    %v1623 = vadd.f32 0.0, %v1622
    %v1624 = vpop.f32.mrf.mxu0
    %v1625 = vadd.f32 0.0, %v1624
    %1626 = vmatprep.mubr.f32.mxu0 0.0
    %1627 = vmatmul.mubr.f32.gmra.mxu0 %v1422
    %v1628 = vpop.f32.mrf.mxu0
    %v1629 = vadd.f32 0.0, %v1628
    %v1630 = vpop.f32.mrf.mxu0
    %v1631 = vadd.f32 0.0, %v1630
    %1632 = vmatprep.mubr.f32.mxu0 0.0
    %1633 = vmatmul.mubr.f32.gmra.mxu0 %v1425
    %v1634 = vpop.f32.mrf.mxu0
    %v1635 = vadd.f32 0.0, %v1634
    %v1636 = vpop.f32.mrf.mxu0
    %v1637 = vadd.f32 0.0, %v1636
    %1638 = vmatprep.mubr.f32.mxu0 0.0
    %1639 = vmatmul.mubr.f32.gmra.mxu0 %v1428
    %v1640 = vpop.f32.mrf.mxu0
    %v1641 = vadd.f32 0.0, %v1640
    %v1642 = vpop.f32.mrf.mxu0
    %v1643 = vadd.f32 0.0, %v1642
    %1644 = vmatprep.mubr.f32.mxu0 0.0
    %1645 = vmatmul.mubr.f32.gmra.mxu0 %v1431
    %v1646 = vpop.f32.mrf.mxu0
    %v1647 = vadd.f32 0.0, %v1646
    %v1648 = vpop.f32.mrf.mxu0
    %v1649 = vadd.f32 0.0, %v1648
    %1650 = vmatprep.mubr.f32.mxu0 0.0
    %1651 = vmatmul.mubr.f32.gmra.mxu0 %v1434
    %v1652 = vpop.f32.mrf.mxu0
    %v1653 = vadd.f32 0.0, %v1652
    %v1654 = vpop.f32.mrf.mxu0
    %v1655 = vadd.f32 0.0, %v1654
    %1656 = vmatprep.mubr.f32.mxu0 0.0
    %1657 = vmatmul.mubr.f32.gmra.mxu0 %v1437
    %v1658 = vpop.f32.mrf.mxu0
    %v1659 = vadd.f32 0.0, %v1658
    %v1660 = vpop.f32.mrf.mxu0
    %v1661 = vadd.f32 0.0, %v1660
    %1662 = vmatprep.mubr.f32.mxu0 0.0
    %1663 = vmatmul.mubr.f32.gmra.mxu0 %v1440
    %v1664 = vpop.f32.mrf.mxu0
    %v1665 = vadd.f32 0.0, %v1664
    %v1666 = vpop.f32.mrf.mxu0
    %v1667 = vadd.f32 0.0, %v1666
    %1668 = vmatprep.mubr.f32.mxu0 0.0
    %1669 = vmatmul.mubr.f32.gmra.mxu0 %v1443
    %v1670 = vpop.f32.mrf.mxu0
    %v1671 = vadd.f32 0.0, %v1670
    %v1672 = vpop.f32.mrf.mxu0
    %v1673 = vadd.f32 0.0, %v1672
    %1674 = vmatprep.mubr.f32.mxu0 0.0
    %1675 = vmatmul.mubr.f32.gmra.mxu0 %v1446
    %v1676 = vpop.f32.mrf.mxu0
    %v1677 = vadd.f32 0.0, %v1676
    %v1678 = vpop.f32.mrf.mxu0
    %v1679 = vadd.f32 0.0, %v1678
    %1680 = vmatprep.mubr.f32.mxu0 0.0
    %1681 = vmatmul.mubr.f32.gmra.mxu0 %v1449
    %v1682 = vpop.f32.mrf.mxu0
    %v1683 = vadd.f32 0.0, %v1682
    %v1684 = vpop.f32.mrf.mxu0
    %v1685 = vadd.f32 0.0, %v1684
    %1686 = vmatprep.mubr.f32.mxu0 0.0
    %1687 = vmatmul.mubr.f32.gmra.mxu0 %v1452
    %v1688 = vpop.f32.mrf.mxu0
    %v1689 = vadd.f32 0.0, %v1688
    %v1690 = vpop.f32.mrf.mxu0
    %v1691 = vadd.f32 0.0, %v1690
    %1692 = vmatprep.mubr.f32.mxu0 0.0
    %1693 = vmatmul.mubr.f32.gmra.mxu0 %v1455
    %v1694 = vpop.f32.mrf.mxu0
    %v1695 = vadd.f32 0.0, %v1694
    %v1696 = vpop.f32.mrf.mxu0
    %v1697 = vadd.f32 0.0, %v1696
    %1698 = vmatprep.mubr.f32.mxu0 0.0
    %1699 = vmatmul.mubr.f32.gmra.mxu0 %v1458
    %v1700 = vpop.f32.mrf.mxu0
    %v1701 = vadd.f32 0.0, %v1700
    %v1702 = vpop.f32.mrf.mxu0
    %v1703 = vadd.f32 0.0, %v1702
    %1704 = vmatprep.mubr.f32.mxu0 0.0
    %1705 = vmatmul.mubr.f32.gmra.mxu0 %v1461
    %v1706 = vpop.f32.mrf.mxu0
    %v1707 = vadd.f32 0.0, %v1706
    %v1708 = vpop.f32.mrf.mxu0
    %v1709 = vadd.f32 0.0, %v1708
    %1710 = vmatprep.mubr.f32.mxu0 0.0
    %1711 = vmatmul.mubr.f32.gmra.mxu0 %v1464
    %v1712 = vpop.f32.mrf.mxu0
    %v1713 = vadd.f32 0.0, %v1712
    %v1714 = vpop.f32.mrf.mxu0
    %v1715 = vadd.f32 0.0, %v1714
    %1716 = vmatprep.mubr.f32.mxu0 0.0
    %1717 = vmatmul.mubr.f32.gmra.mxu0 %v1467
    %v1718 = vpop.f32.mrf.mxu0
    %v1719 = vadd.f32 0.0, %v1718
    %v1720 = vpop.f32.mrf.mxu0
    %v1721 = vadd.f32 0.0, %v1720
    %1722 = vmatprep.mubr.f32.mxu0 0.0
    %1723 = vmatmul.mubr.f32.gmra.mxu0 %v1470
    %v1724 = vpop.f32.mrf.mxu0
    %v1725 = vadd.f32 0.0, %v1724
    %v1726 = vpop.f32.mrf.mxu0
    %v1727 = vadd.f32 0.0, %v1726
    %1728 = vdwg.mxu0
    %v1729 = vmax.f32 %v1539, %v1551
    %v1730 = vmax.f32 %v1545, %v1557
    %v1731 = vmax.f32 %v1729, %v1563
    %v1732 = vmax.f32 %v1730, %v1569
    %v1733 = vmax.f32 %v1731, %v1575
    %v1734 = vmax.f32 %v1732, %v1581
    %v1735 = vmax.f32 %v1733, %v1587
    %v1736 = vmax.f32 %v1734, %v1593
    %v1737 = vmax.f32 %v1735, %v1599
    %v1738 = vmax.f32 %v1736, %v1605
    %v1739 = vmax.f32 %v1737, %v1611
    %v1740 = vmax.f32 %v1738, %v1617
    %v1741 = vmax.f32 %v1739, %v1623
    %v1742 = vmax.f32 %v1740, %v1629
    %v1743 = vmax.f32 %v1741, %v1635
    %v1744 = vmax.f32 %v1742, %v1641
    %v1745 = vmax.f32 %v1743, %v1647
    %v1746 = vmax.f32 %v1744, %v1653
    %v1747 = vmax.f32 %v1745, %v1659
    %v1748 = vmax.f32 %v1746, %v1665
    %v1749 = vmax.f32 %v1747, %v1671
    %v1750 = vmax.f32 %v1748, %v1677
    %v1751 = vmax.f32 %v1749, %v1683
    %v1752 = vmax.f32 %v1750, %v1689
    %v1753 = vmax.f32 %v1751, %v1695
    %v1754 = vmax.f32 %v1752, %v1701
    %v1755 = vmax.f32 %v1753, %v1707
    %v1756 = vmax.f32 %v1754, %v1713
    %v1757 = vmax.f32 %v1755, %v1719
    %v1758 = vmax.f32 %v1756, %v1725
    %v1759 = vmax.f32 %v1757, %v1758
    %v1760 = vrot.slane %v1759, 4
    %v1761 = vmax.f32 %v1759, %v1760
    %v1762 = vrot.slane %v1761, 2
    %v1763 = vmax.f32 %v1761, %v1762
    %v1764 = vrot.slane %v1763, 1
    %v1765 = vmax.f32 %v1763, %v1764
    %v1766 = vmax.f32 %v1541, %v1553
    %v1767 = vmax.f32 %v1547, %v1559
    %v1768 = vmax.f32 %v1766, %v1565
    %v1769 = vmax.f32 %v1767, %v1571
    %v1770 = vmax.f32 %v1768, %v1577
    %v1771 = vmax.f32 %v1769, %v1583
    %v1772 = vmax.f32 %v1770, %v1589
    %v1773 = vmax.f32 %v1771, %v1595
    %v1774 = vmax.f32 %v1772, %v1601
    %v1775 = vmax.f32 %v1773, %v1607
    %v1776 = vmax.f32 %v1774, %v1613
    %v1777 = vmax.f32 %v1775, %v1619
    %v1778 = vmax.f32 %v1776, %v1625
    %v1779 = vmax.f32 %v1777, %v1631
    %v1780 = vmax.f32 %v1778, %v1637
    %v1781 = vmax.f32 %v1779, %v1643
    %v1782 = vmax.f32 %v1780, %v1649
    %v1783 = vmax.f32 %v1781, %v1655
    %v1784 = vmax.f32 %v1782, %v1661
    %v1785 = vmax.f32 %v1783, %v1667
    %v1786 = vmax.f32 %v1784, %v1673
    %v1787 = vmax.f32 %v1785, %v1679
    %v1788 = vmax.f32 %v1786, %v1685
    %v1789 = vmax.f32 %v1787, %v1691
    %v1790 = vmax.f32 %v1788, %v1697
    %v1791 = vmax.f32 %v1789, %v1703
    %v1792 = vmax.f32 %v1790, %v1709
    %v1793 = vmax.f32 %v1791, %v1715
    %v1794 = vmax.f32 %v1792, %v1721
    %v1795 = vmax.f32 %v1793, %v1727
    %v1796 = vmax.f32 %v1794, %v1795
    %v1797 = vrot.slane %v1796, 4
    %v1798 = vmax.f32 %v1796, %v1797
    %v1799 = vrot.slane %v1798, 2
    %v1800 = vmax.f32 %v1798, %v1799
    %v1801 = vrot.slane %v1800, 1
    %v1802 = vmax.f32 %v1800, %v1801
    %v1803 = vsub.f32 %v1539, %v1765
    %v1804 = vsub.f32 %v1541, %v1802
    %v1805 = vsub.f32 %v1545, %v1765
    %v1806 = vsub.f32 %v1547, %v1802
    %v1807 = vsub.f32 %v1551, %v1765
    %v1808 = vsub.f32 %v1553, %v1802
    %v1809 = vsub.f32 %v1557, %v1765
    %v1810 = vsub.f32 %v1559, %v1802
    %v1811 = vsub.f32 %v1563, %v1765
    %v1812 = vsub.f32 %v1565, %v1802
    %v1813 = vsub.f32 %v1569, %v1765
    %v1814 = vsub.f32 %v1571, %v1802
    %v1815 = vsub.f32 %v1575, %v1765
    %v1816 = vsub.f32 %v1577, %v1802
    %v1817 = vsub.f32 %v1581, %v1765
    %v1818 = vsub.f32 %v1583, %v1802
    %v1819 = vsub.f32 %v1587, %v1765
    %v1820 = vsub.f32 %v1589, %v1802
    %v1821 = vsub.f32 %v1593, %v1765
    %v1822 = vsub.f32 %v1595, %v1802
    %v1823 = vsub.f32 %v1599, %v1765
    %v1824 = vsub.f32 %v1601, %v1802
    %v1825 = vsub.f32 %v1605, %v1765
    %v1826 = vsub.f32 %v1607, %v1802
    %v1827 = vsub.f32 %v1611, %v1765
    %v1828 = vsub.f32 %v1613, %v1802
    %v1829 = vsub.f32 %v1617, %v1765
    %v1830 = vsub.f32 %v1619, %v1802
    %v1831 = vsub.f32 %v1623, %v1765
    %v1832 = vsub.f32 %v1625, %v1802
    %v1833 = vsub.f32 %v1629, %v1765
    %v1834 = vsub.f32 %v1631, %v1802
    %v1835 = vsub.f32 %v1635, %v1765
    %v1836 = vsub.f32 %v1637, %v1802
    %v1837 = vsub.f32 %v1641, %v1765
    %v1838 = vsub.f32 %v1643, %v1802
    %v1839 = vsub.f32 %v1647, %v1765
    %v1840 = vsub.f32 %v1649, %v1802
    %v1841 = vsub.f32 %v1653, %v1765
    %v1842 = vsub.f32 %v1655, %v1802
    %v1843 = vsub.f32 %v1659, %v1765
    %v1844 = vsub.f32 %v1661, %v1802
    %v1845 = vsub.f32 %v1665, %v1765
    %v1846 = vsub.f32 %v1667, %v1802
    %v1847 = vsub.f32 %v1671, %v1765
    %v1848 = vsub.f32 %v1673, %v1802
    %v1849 = vsub.f32 %v1677, %v1765
    %v1850 = vsub.f32 %v1679, %v1802
    %v1851 = vsub.f32 %v1683, %v1765
    %v1852 = vsub.f32 %v1685, %v1802
    %v1853 = vsub.f32 %v1689, %v1765
    %v1854 = vsub.f32 %v1691, %v1802
    %v1855 = vsub.f32 %v1695, %v1765
    %v1856 = vsub.f32 %v1697, %v1802
    %v1857 = vsub.f32 %v1701, %v1765
    %v1858 = vsub.f32 %v1703, %v1802
    %v1859 = vsub.f32 %v1707, %v1765
    %v1860 = vsub.f32 %v1709, %v1802
    %v1861 = vsub.f32 %v1713, %v1765
    %v1862 = vsub.f32 %v1715, %v1802
    %v1863 = vsub.f32 %v1719, %v1765
    %v1864 = vsub.f32 %v1721, %v1802
    %v1865 = vsub.f32 %v1725, %v1765
    %v1866 = vsub.f32 %v1727, %v1802
    %v1867 = vmul.f32 %v1803, 1.442695
    %v1868 = vpow.pop %v1867
    %v1869 = vmul.f32 %v1804, 1.442695
    %v1870 = vpow.pop %v1869
    %v1871 = vmul.f32 %v1805, 1.442695
    %v1872 = vpow.pop %v1871
    %v1873 = vmul.f32 %v1806, 1.442695
    %v1874 = vpow.pop %v1873
    %v1875 = vmul.f32 %v1807, 1.442695
    %v1876 = vpow.pop %v1875
    %v1877 = vmul.f32 %v1808, 1.442695
    %v1878 = vpow.pop %v1877
    %v1879 = vmul.f32 %v1809, 1.442695
    %v1880 = vpow.pop %v1879
    %v1881 = vmul.f32 %v1810, 1.442695
    %v1882 = vpow.pop %v1881
    %v1883 = vmul.f32 %v1811, 1.442695
    %v1884 = vpow.pop %v1883
    %v1885 = vmul.f32 %v1812, 1.442695
    %v1886 = vpow.pop %v1885
    %v1887 = vmul.f32 %v1813, 1.442695
    %v1888 = vpow.pop %v1887
    %v1889 = vmul.f32 %v1814, 1.442695
    %v1890 = vpow.pop %v1889
    %v1891 = vmul.f32 %v1815, 1.442695
    %v1892 = vpow.pop %v1891
    %v1893 = vmul.f32 %v1816, 1.442695
    %v1894 = vpow.pop %v1893
    %v1895 = vmul.f32 %v1817, 1.442695
    %v1896 = vpow.pop %v1895
    %v1897 = vmul.f32 %v1818, 1.442695
    %v1898 = vpow.pop %v1897
    %v1899 = vmul.f32 %v1819, 1.442695
    %v1900 = vpow.pop %v1899
    %v1901 = vmul.f32 %v1820, 1.442695
    %v1902 = vpow.pop %v1901
    %v1903 = vmul.f32 %v1821, 1.442695
    %v1904 = vpow.pop %v1903
    %v1905 = vmul.f32 %v1822, 1.442695
    %v1906 = vpow.pop %v1905
    %v1907 = vmul.f32 %v1823, 1.442695
    %v1908 = vpow.pop %v1907
    %v1909 = vmul.f32 %v1824, 1.442695
    %v1910 = vpow.pop %v1909
    %v1911 = vmul.f32 %v1825, 1.442695
    %v1912 = vpow.pop %v1911
    %v1913 = vmul.f32 %v1826, 1.442695
    %v1914 = vpow.pop %v1913
    %v1915 = vmul.f32 %v1827, 1.442695
    %v1916 = vpow.pop %v1915
    %v1917 = vmul.f32 %v1828, 1.442695
    %v1918 = vpow.pop %v1917
    %v1919 = vmul.f32 %v1829, 1.442695
    %v1920 = vpow.pop %v1919
    %v1921 = vmul.f32 %v1830, 1.442695
    %v1922 = vpow.pop %v1921
    %v1923 = vmul.f32 %v1831, 1.442695
    %v1924 = vpow.pop %v1923
    %v1925 = vmul.f32 %v1832, 1.442695
    %v1926 = vpow.pop %v1925
    %v1927 = vmul.f32 %v1833, 1.442695
    %v1928 = vpow.pop %v1927
    %v1929 = vmul.f32 %v1834, 1.442695
    %v1930 = vpow.pop %v1929
    %v1931 = vmul.f32 %v1835, 1.442695
    %v1932 = vpow.pop %v1931
    %v1933 = vmul.f32 %v1836, 1.442695
    %v1934 = vpow.pop %v1933
    %v1935 = vmul.f32 %v1837, 1.442695
    %v1936 = vpow.pop %v1935
    %v1937 = vmul.f32 %v1838, 1.442695
    %v1938 = vpow.pop %v1937
    %v1939 = vmul.f32 %v1839, 1.442695
    %v1940 = vpow.pop %v1939
    %v1941 = vmul.f32 %v1840, 1.442695
    %v1942 = vpow.pop %v1941
    %v1943 = vmul.f32 %v1841, 1.442695
    %v1944 = vpow.pop %v1943
    %v1945 = vmul.f32 %v1842, 1.442695
    %v1946 = vpow.pop %v1945
    %v1947 = vmul.f32 %v1843, 1.442695
    %v1948 = vpow.pop %v1947
    %v1949 = vmul.f32 %v1844, 1.442695
    %v1950 = vpow.pop %v1949
    %v1951 = vmul.f32 %v1845, 1.442695
    %v1952 = vpow.pop %v1951
    %v1953 = vmul.f32 %v1846, 1.442695
    %v1954 = vpow.pop %v1953
    %v1955 = vmul.f32 %v1847, 1.442695
    %v1956 = vpow.pop %v1955
    %v1957 = vmul.f32 %v1848, 1.442695
    %v1958 = vpow.pop %v1957
    %v1959 = vmul.f32 %v1849, 1.442695
    %v1960 = vpow.pop %v1959
    %v1961 = vmul.f32 %v1850, 1.442695
    %v1962 = vpow.pop %v1961
    %v1963 = vmul.f32 %v1851, 1.442695
    %v1964 = vpow.pop %v1963
    %v1965 = vmul.f32 %v1852, 1.442695
    %v1966 = vpow.pop %v1965
    %v1967 = vmul.f32 %v1853, 1.442695
    %v1968 = vpow.pop %v1967
    %v1969 = vmul.f32 %v1854, 1.442695
    %v1970 = vpow.pop %v1969
    %v1971 = vmul.f32 %v1855, 1.442695
    %v1972 = vpow.pop %v1971
    %v1973 = vmul.f32 %v1856, 1.442695
    %v1974 = vpow.pop %v1973
    %v1975 = vmul.f32 %v1857, 1.442695
    %v1976 = vpow.pop %v1975
    %v1977 = vmul.f32 %v1858, 1.442695
    %v1978 = vpow.pop %v1977
    %v1979 = vmul.f32 %v1859, 1.442695
    %v1980 = vpow.pop %v1979
    %v1981 = vmul.f32 %v1860, 1.442695
    %v1982 = vpow.pop %v1981
    %v1983 = vmul.f32 %v1861, 1.442695
    %v1984 = vpow.pop %v1983
    %v1985 = vmul.f32 %v1862, 1.442695
    %v1986 = vpow.pop %v1985
    %v1987 = vmul.f32 %v1863, 1.442695
    %v1988 = vpow.pop %v1987
    %v1989 = vmul.f32 %v1864, 1.442695
    %v1990 = vpow.pop %v1989
    %v1991 = vmul.f32 %v1865, 1.442695
    %v1992 = vpow.pop %v1991
    %v1993 = vmul.f32 %v1866, 1.442695
    %v1994 = vpow.pop %v1993
    %v1995 = vadd.f32 %v1868, %v1872
    %v1996 = vadd.f32 %v1995, %v1876
    %v1997 = vadd.f32 %v1996, %v1880
    %v1998 = vadd.f32 %v1997, %v1884
    %v1999 = vadd.f32 %v1998, %v1888
    %v2000 = vadd.f32 %v1999, %v1892
    %v2001 = vadd.f32 %v2000, %v1896
    %v2002 = vadd.f32 %v2001, %v1900
    %v2003 = vadd.f32 %v2002, %v1904
    %v2004 = vadd.f32 %v2003, %v1908
    %v2005 = vadd.f32 %v2004, %v1912
    %v2006 = vadd.f32 %v2005, %v1916
    %v2007 = vadd.f32 %v2006, %v1920
    %v2008 = vadd.f32 %v2007, %v1924
    %v2009 = vadd.f32 %v2008, %v1928
    %v2010 = vadd.f32 %v2009, %v1932
    %v2011 = vadd.f32 %v2010, %v1936
    %v2012 = vadd.f32 %v2011, %v1940
    %v2013 = vadd.f32 %v2012, %v1944
    %v2014 = vadd.f32 %v2013, %v1948
    %v2015 = vadd.f32 %v2014, %v1952
    %v2016 = vadd.f32 %v2015, %v1956
    %v2017 = vadd.f32 %v2016, %v1960
    %v2018 = vadd.f32 %v2017, %v1964
    %v2019 = vadd.f32 %v2018, %v1968
    %v2020 = vadd.f32 %v2019, %v1972
    %v2021 = vadd.f32 %v2020, %v1976
    %v2022 = vadd.f32 %v2021, %v1980
    %v2023 = vadd.f32 %v2022, %v1984
    %v2024 = vadd.f32 %v2023, %v1988
    %v2025 = vadd.f32 %v2024, %v1992
    %v2026 = vrot.slane %v2025, 4
    %v2027 = vadd.f32 %v2025, %v2026
    %v2028 = vrot.slane %v2027, 2
    %v2029 = vadd.f32 %v2027, %v2028
    %v2030 = vrot.slane %v2029, 1
    %v2031 = vadd.f32 %v2029, %v2030
    %v2032 = vadd.f32 %v1870, %v1874
    %v2033 = vadd.f32 %v2032, %v1878
    %v2034 = vadd.f32 %v2033, %v1882
    %v2035 = vadd.f32 %v2034, %v1886
    %v2036 = vadd.f32 %v2035, %v1890
    %v2037 = vadd.f32 %v2036, %v1894
    %v2038 = vadd.f32 %v2037, %v1898
    %v2039 = vadd.f32 %v2038, %v1902
    %v2040 = vadd.f32 %v2039, %v1906
    %v2041 = vadd.f32 %v2040, %v1910
    %v2042 = vadd.f32 %v2041, %v1914
    %v2043 = vadd.f32 %v2042, %v1918
    %v2044 = vadd.f32 %v2043, %v1922
    %v2045 = vadd.f32 %v2044, %v1926
    %v2046 = vadd.f32 %v2045, %v1930
    %v2047 = vadd.f32 %v2046, %v1934
    %v2048 = vadd.f32 %v2047, %v1938
    %v2049 = vadd.f32 %v2048, %v1942
    %v2050 = vadd.f32 %v2049, %v1946
    %v2051 = vadd.f32 %v2050, %v1950
    %v2052 = vadd.f32 %v2051, %v1954
    %v2053 = vadd.f32 %v2052, %v1958
    %v2054 = vadd.f32 %v2053, %v1962
    %v2055 = vadd.f32 %v2054, %v1966
    %v2056 = vadd.f32 %v2055, %v1970
    %v2057 = vadd.f32 %v2056, %v1974
    %v2058 = vadd.f32 %v2057, %v1978
    %v2059 = vadd.f32 %v2058, %v1982
    %v2060 = vadd.f32 %v2059, %v1986
    %v2061 = vadd.f32 %v2060, %v1990
    %v2062 = vadd.f32 %v2061, %v1994
    %v2063 = vrot.slane %v2062, 4
    %v2064 = vadd.f32 %v2062, %v2063
    %v2065 = vrot.slane %v2064, 2
    %v2066 = vadd.f32 %v2064, %v2065
    %v2067 = vrot.slane %v2066, 1
    %v2068 = vadd.f32 %v2066, %v2067
    %v2069 = vrcp.pop %v2031
    %v2070 = vrcp.pop %v2068
    %v2071 = vmul.f32 %v1302, %v2069
    %v2072 = vmul.f32 %v1304, %v2070
    %v2073 = vmul.f32 %v1308, %v2069
    %v2074 = vmul.f32 %v1310, %v2070
    %2075 = vmatprep.subr.mxu0 %v1930
    %2076 = vmatpush1.xpose.msra.mxu0 %v1928
    %2077 = vmatprep.subr.mxu0 %v1926
    %2078 = vmatpush1.xpose.msra.mxu0 %v1924
    %2079 = vmatprep.subr.mxu0 %v1922
    %2080 = vmatpush1.xpose.msra.mxu0 %v1920
    %2081 = vmatprep.subr.mxu0 %v1918
    %2082 = vmatpush1.xpose.msra.mxu0 %v1916
    %2083 = vmatprep.subr.mxu0 %v1914
    %2084 = vmatpush1.xpose.msra.mxu0 %v1912
    %2085 = vmatprep.subr.mxu0 %v1910
    %2086 = vmatpush1.xpose.msra.mxu0 %v1908
    %2087 = vmatprep.subr.mxu0 %v1906
    %2088 = vmatpush1.xpose.msra.mxu0 %v1904
    %2089 = vmatprep.subr.mxu0 %v1902
    %2090 = vmatpush1.xpose.msra.mxu0 %v1900
    %2091 = vmatprep.subr.mxu0 %v1898
    %2092 = vmatpush1.xpose.msra.mxu0 %v1896
    %2093 = vmatprep.subr.mxu0 %v1894
    %2094 = vmatpush1.xpose.msra.mxu0 %v1892
    %2095 = vmatprep.subr.mxu0 %v1890
    %2096 = vmatpush1.xpose.msra.mxu0 %v1888
    %2097 = vmatprep.subr.mxu0 %v1886
    %2098 = vmatpush1.xpose.msra.mxu0 %v1884
    %2099 = vmatprep.subr.mxu0 %v1882
    %2100 = vmatpush1.xpose.msra.mxu0 %v1880
    %2101 = vmatprep.subr.mxu0 %v1878
    %2102 = vmatpush1.xpose.msra.mxu0 %v1876
    %2103 = vmatprep.subr.mxu0 %v1874
    %2104 = vmatpush1.xpose.msra.mxu0 %v1872
    %2105 = vmatprep.subr.mxu0 %v1870
    %2106 = vmatpush1.xpose.msra.mxu0 %v1868
    %2107 = vmatprep.subr.mxu0 %v1994
    %2108 = vmatpush2.xpose.msra.mxu0 %v1992
    %2109 = vmatprep.subr.mxu0 %v1990
    %2110 = vmatpush2.xpose.msra.mxu0 %v1988
    %2111 = vmatprep.subr.mxu0 %v1986
    %2112 = vmatpush2.xpose.msra.mxu0 %v1984
    %2113 = vmatprep.subr.mxu0 %v1982
    %2114 = vmatpush2.xpose.msra.mxu0 %v1980
    %2115 = vmatprep.subr.mxu0 %v1978
    %2116 = vmatpush2.xpose.msra.mxu0 %v1976
    %2117 = vmatprep.subr.mxu0 %v1974
    %2118 = vmatpush2.xpose.msra.mxu0 %v1972
    %2119 = vmatprep.subr.mxu0 %v1970
    %2120 = vmatpush2.xpose.msra.mxu0 %v1968
    %2121 = vmatprep.subr.mxu0 %v1966
    %2122 = vmatpush2.xpose.msra.mxu0 %v1964
    %2123 = vmatprep.subr.mxu0 %v1962
    %2124 = vmatpush2.xpose.msra.mxu0 %v1960
    %2125 = vmatprep.subr.mxu0 %v1958
    %2126 = vmatpush2.xpose.msra.mxu0 %v1956
    %2127 = vmatprep.subr.mxu0 %v1954
    %2128 = vmatpush2.xpose.msra.mxu0 %v1952
    %2129 = vmatprep.subr.mxu0 %v1950
    %2130 = vmatpush2.xpose.msra.mxu0 %v1948
    %2131 = vmatprep.subr.mxu0 %v1946
    %2132 = vmatpush2.xpose.msra.mxu0 %v1944
    %2133 = vmatprep.subr.mxu0 %v1942
    %2134 = vmatpush2.xpose.msra.mxu0 %v1940
    %2135 = vmatprep.subr.mxu0 %v1938
    %2136 = vmatpush2.xpose.msra.mxu0 %v1936
    %2137 = vmatprep.subr.mxu0 %v1934
    %2138 = vmatpush2.xpose.msra.mxu0 %v1932
    %2139 = vmatprep.mubr.f32.mxu0 %v2072
    %2140 = vmatmul.mubr.f32.gmra.mxu0 %v2071
    %v2141 = vpop.f32.mrf.mxu0
    %v2142 = vadd.f32 0.0, %v2141
    %v2143 = vpop.f32.mrf.mxu0
    %v2144 = vadd.f32 0.0, %v2143
    %2145 = vmatprep.mubr.f32.mxu0 %v2074
    %2146 = vmatmul.mubr.f32.gmra.mxu0 %v2073
    %v2147 = vpop.f32.mrf.mxu0
    %v2148 = vadd.f32 0.0, %v2147
    %v2149 = vpop.f32.mrf.mxu0
    %v2150 = vadd.f32 0.0, %v2149
    %2151 = vdwg.mxu0
    %v2152 = vld [vmem:[%s4] sm:$0xff]
    %v2153 = vld [vmem:[%s4 + $0x8] sm:$0xff]
    %v2154 = vld [vmem:[%s4 + $0x10] sm:$0xff]
    %v2155 = vld [vmem:[%s4 + $0x18] sm:$0xff]
    %v2156 = vld [vmem:[%s5] sm:$0xff]
    %v2157 = vld [vmem:[%s5 + $0x8] sm:$0xff]
    %v2158 = vld [vmem:[%s5 + $0x10] sm:$0xff]
    %v2159 = vld [vmem:[%s5 + $0x18] sm:$0xff]
    %2161 = vset.pattern.permute.xlu0 0
    %2162 = vperm.xlu0 %2161, %v2156
    %v2163 = vpop.permute.xlu0 %2162
    %2166 = vset.pattern.permute.xlu0 0
    %2167 = vperm.xlu0 %2166, %v2157
    %v2168 = vpop.permute.xlu0 %2167
    %2171 = vset.pattern.permute.xlu0 0
    %2172 = vperm.xlu0 %2171, %v2158
    %v2173 = vpop.permute.xlu0 %2172
    %2176 = vset.pattern.permute.xlu0 0
    %2177 = vperm.xlu0 %2176, %v2159
    %v2178 = vpop.permute.xlu0 %2177
    %v2181 = vsel %vm1047, %v2152, 0
    %v2184 = vsel %vm1047, %v2153, 0
    %v2187 = vsel %vm1047, %v2154, 0
    %v2190 = vsel %vm1047, %v2155, 0
    %2192 = vmatprep.subr.mxu0 0.0
    %2193 = vmatpush1.msra.mxu0 0.0
    %2194 = vmatprep.subr.mxu0 0.0
    %2195 = vmatpush1.msra.mxu0 0.0
    %2196 = vmatprep.subr.mxu0 0.0
    %2197 = vmatpush1.msra.mxu0 0.0
    %2198 = vmatprep.subr.mxu0 0.0
    %2199 = vmatpush1.msra.mxu0 0.0
    %2200 = vmatprep.subr.mxu0 0.0
    %2201 = vmatpush1.msra.mxu0 0.0
    %2202 = vmatprep.subr.mxu0 0.0
    %2203 = vmatpush1.msra.mxu0 0.0
    %2204 = vmatprep.subr.mxu0 0.0
    %2205 = vmatpush1.msra.mxu0 0.0
    %2206 = vmatprep.subr.mxu0 0.0
    %2207 = vmatpush1.msra.mxu0 0.0
    %2208 = vmatprep.subr.mxu0 0.0
    %2209 = vmatpush1.msra.mxu0 0.0
    %2210 = vmatprep.subr.mxu0 0.0
    %2211 = vmatpush1.msra.mxu0 0.0
    %2212 = vmatprep.subr.mxu0 0.0
    %2213 = vmatpush1.msra.mxu0 0.0
    %2214 = vmatprep.subr.mxu0 0.0
    %2215 = vmatpush1.msra.mxu0 0.0
    %2216 = vmatprep.subr.mxu0 0.0
    %2217 = vmatpush1.msra.mxu0 0.0
    %2218 = vmatprep.subr.mxu0 0.0
    %2219 = vmatpush1.msra.mxu0 0.0
    %2220 = vmatprep.subr.mxu0 %v2150
    %2221 = vmatpush1.msra.mxu0 %v2148
    %2222 = vmatprep.subr.mxu0 %v2144
    %2223 = vmatpush1.msra.mxu0 %v2142
    %2224 = vmatprep.subr.mxu0 0.0
    %2225 = vmatpush2.msra.mxu0 0.0
    %2226 = vmatprep.subr.mxu0 0.0
    %2227 = vmatpush2.msra.mxu0 0.0
    %2228 = vmatprep.subr.mxu0 0.0
    %2229 = vmatpush2.msra.mxu0 0.0
    %2230 = vmatprep.subr.mxu0 0.0
    %2231 = vmatpush2.msra.mxu0 0.0
    %2232 = vmatprep.subr.mxu0 0.0
    %2233 = vmatpush2.msra.mxu0 0.0
    %2234 = vmatprep.subr.mxu0 0.0
    %2235 = vmatpush2.msra.mxu0 0.0
    %2236 = vmatprep.subr.mxu0 0.0
    %2237 = vmatpush2.msra.mxu0 0.0
    %2238 = vmatprep.subr.mxu0 0.0
    %2239 = vmatpush2.msra.mxu0 0.0
    %2240 = vmatprep.subr.mxu0 0.0
    %2241 = vmatpush2.msra.mxu0 0.0
    %2242 = vmatprep.subr.mxu0 0.0
    %2243 = vmatpush2.msra.mxu0 0.0
    %2244 = vmatprep.subr.mxu0 0.0
    %2245 = vmatpush2.msra.mxu0 0.0
    %2246 = vmatprep.subr.mxu0 0.0
    %2247 = vmatpush2.msra.mxu0 0.0
    %2248 = vmatprep.subr.mxu0 0.0
    %2249 = vmatpush2.msra.mxu0 0.0
    %2250 = vmatprep.subr.mxu0 0.0
    %2251 = vmatpush2.msra.mxu0 0.0
    %2252 = vmatprep.subr.mxu0 0.0
    %2253 = vmatpush2.msra.mxu0 0.0
    %2254 = vmatprep.subr.mxu0 0.0
    %2255 = vmatpush2.msra.mxu0 0.0
    %2256 = vmatprep.mubr.f32.mxu0 0.0
    %2257 = vmatmul.mubr.f32.gmra.mxu0 %v2181
    %v2258 = vpop.f32.mrf.mxu0
    %v2259 = vadd.f32 %v2163, %v2258
    %v2260 = vpop.f32.mrf.mxu0
    %v2261 = vadd.f32 %v2163, %v2260
    %2262 = vmatprep.mubr.f32.mxu0 0.0
    %2263 = vmatmul.mubr.f32.gmra.mxu0 %v2184
    %v2264 = vpop.f32.mrf.mxu0
    %v2265 = vadd.f32 %v2168, %v2264
    %v2266 = vpop.f32.mrf.mxu0
    %v2267 = vadd.f32 %v2168, %v2266
    %2268 = vmatprep.mubr.f32.mxu0 0.0
    %2269 = vmatmul.mubr.f32.gmra.mxu0 %v2187
    %v2270 = vpop.f32.mrf.mxu0
    %v2271 = vadd.f32 %v2173, %v2270
    %v2272 = vpop.f32.mrf.mxu0
    %v2273 = vadd.f32 %v2173, %v2272
    %2274 = vmatprep.mubr.f32.mxu0 0.0
    %2275 = vmatmul.mubr.f32.gmra.mxu0 %v2190
    %v2276 = vpop.f32.mrf.mxu0
    %v2277 = vadd.f32 %v2178, %v2276
    %v2278 = vpop.f32.mrf.mxu0
    %v2279 = vadd.f32 %v2178, %v2278
    %2280 = vdwg.mxu0
    %v2281 = vmul.f32 %v1149, %v2259
    %v2282 = vmul.f32 %v1149, %v2261
    %v2283 = vmul.f32 %v1149, %v2265
    %v2284 = vmul.f32 %v1149, %v2267
    %v2285 = vmul.f32 %v1149, %v2271
    %v2286 = vmul.f32 %v1149, %v2273
    %v2287 = vmul.f32 %v1149, %v2277
    %v2288 = vmul.f32 %v1149, %v2279
    %v2289 = vadd.f32 %v1175, %v2281
    %v2290 = vadd.f32 %v1176, %v2282
    %v2291 = vadd.f32 %v1177, %v2283
    %v2292 = vadd.f32 %v1178, %v2284
    %v2293 = vadd.f32 %v1179, %v2285
    %v2294 = vadd.f32 %v1180, %v2286
    %v2295 = vadd.f32 %v1181, %v2287
    %v2296 = vadd.f32 %v1182, %v2288
    %s2297 = scalar_lea.vmem [#allocation6], 64
    %2298 = vst [vmem:[%s2297] sm:$0xff] %v2289
    %2299 = vst [vmem:[%s2297 + $0x8] sm:$0xff] %v2290
    %2300 = vst [vmem:[%s2297 + $0x10] sm:$0xff] %v2291
    %2301 = vst [vmem:[%s2297 + $0x18] sm:$0xff] %v2292
    %2302 = vst [vmem:[%s2297 + $0x20] sm:$0xff] %v2293
    %2303 = vst [vmem:[%s2297 + $0x28] sm:$0xff] %v2294
    %2304 = vst [vmem:[%s2297 + $0x30] sm:$0xff] %v2295
    %2305 = vst [vmem:[%s2297 + $0x38] sm:$0xff] %v2296
    // Predicated region
    $region30: #{tpu_custom_call.1} parent=1 // pred_check
      _
    $region31: #{tpu_custom_call.1} parent=1 // pred_check_branch
      %2307 = sbr.rel (0) target = $region33
    $region32: #{tpu_custom_call.1} parent=1 // pred_region
      %s2309 = ssub.s32 2048, 2048
      %2310 = vsyncadd [#allocation5], %s2309
      %s2311 = sshll.u32 [#allocation6], 4
      %s2312 = int_to_ptr.vmem [resolvable:$true] %s2311
      %2317 = dma.vmem_to_hbm [thread:$0]  %s2312, 2048, %s6, [#allocation5], 256, 256, 16
    $region33: #{tpu_custom_call.1} parent=1 // pred_fallthru
      _
    // Predicated region
    $region34: #{tpu_custom_call.1} parent=1 // pred_check
      _
    $region35: #{tpu_custom_call.1} parent=1 // pred_check_branch
      %2319 = sbr.rel (0) target = $region37
    $region36: #{tpu_custom_call.1} parent=1 // pred_region
      %2320 = dma.done [#allocation5], 2048
    $region37: #{tpu_custom_call.1} parent=1 // pred_fallthru
      _
    %2321 = vsyncpa [#allocation4], 1
    %2322 = vsyncpa [#allocation5], 1

</llo_original>
